<compile_context>
chip_gen: v7x
topology: tpu7x:2x2x1
jax: 0.10.0
libtpu: 0.0.40
codegen_flags: <defaults>
</compile_context>

<pallas_src>
import math

import jax
import jax.numpy as jnp
from jax.experimental import pallas as pl
from jax.experimental.pallas import tpu as pltpu

# ----------------------------- problem sizes --------------------------------
IN_SCA = 32          # in_sca
IN_VEC = 8           # in_vec
F0, F1 = 32, 8       # num_filters = (32, 8)
K = 4                # n_component
N = 16               # number of focal nodes

H1 = max(IN_VEC, F1)     # dim_hid of first GVLinear  (= 8)
H2 = F1                  # dim_hid of second GVLinear (= 8)
HM = max(F1, K)          # dim_hid of mu / logsigma nets (= 8)
HP = max(F1, 1)          # dim_hid of pi net             (= 8)
assert HM == HP == 8     # head fusion below relies on equal hidden widths

LEAKY_SLOPE_SCA = 0.01   # torch.nn.LeakyReLU default
LEAKY_SLOPE_VEC = 0.2    # VNLeakyReLU negative_slope
EPS = 1e-6

# Parameter table: (name, shape (in, out)-transposed, fan_in for init)
PARAM_SPECS = [
    # GVPerceptronVN -> GVLinear #1
    ("w1_lv",  (IN_VEC, H1), IN_VEC),
    ("w1_lsn", (H1, F0), H1 + IN_SCA),
    ("w1_lss", (IN_SCA, F0), H1 + IN_SCA),
    ("w1_lv2", (H1, F1), H1),
    ("w1_sg",  (F0, F1), F0),
    ("b1_sg",  (1, F1), F0),
    # VNLeakyReLU direction map
    ("w1_dir", (F1, F1), F1),
    # GVLinear #2
    ("w2_lv",  (F1, H2), F1),
    ("w2_lsn", (H2, F0), H2 + F0),
    ("w2_lss", (F0, F0), H2 + F0),
    ("w2_lv2", (H2, F1), H2),
    ("w2_sg",  (F0, F1), F0),
    ("b2_sg",  (1, F1), F0),
    # mu_net
    ("wm_lv",  (F1, HM), F1),
    ("wm_lsn", (HM, K), HM + F0),
    ("wm_lss", (F0, K), HM + F0),
    ("wm_lv2", (HM, K), HM),
    ("wm_sg",  (K, K), K),
    ("bm_sg",  (1, K), K),
    # logsigma_net
    ("ws_lv",  (F1, HM), F1),
    ("ws_lsn", (HM, K), HM + F0),
    ("ws_lss", (F0, K), HM + F0),
    ("ws_lv2", (HM, K), HM),
    ("ws_sg",  (K, K), K),
    ("bs_sg",  (1, K), K),
    # pi_net (only the scalar branch is used by forward)
    ("wp_lv",  (F1, HP), F1),
    ("wp_lsn", (HP, K), HP + F0),
    ("wp_lss", (F0, K), HP + F0),
]
NUM_PARAMS = len(PARAM_SPECS)
# TODO(synk): pi_net's vector branch (lin_vector2 + scalar_to_vector_gates) is
# discarded by forward(); it is intentionally not computed.

# ----------------------- fused / packed weight layout ------------------------
WBUF_COLS = 32   # widest fused matrix has 32 columns

FUSED_SPECS = [
    ("w1_lv",  (IN_VEC, H1)),
    ("W1_s",   (H1 + IN_SCA, F0)),        # [w1_lsn ; w1_lss]
    ("w1_lv2", (H1, F1)),
    ("w1_sg",  (F0, F1)),
    ("b1_sg",  (1, F1)),
    ("w1_dir", (F1, F1)),
    ("w2_lv",  (F1, H2)),
    ("W2_s",   (H2 + F0, F0)),            # [w2_lsn ; w2_lss]
    ("w2_lv2", (H2, F1)),
    ("w2_sg",  (F0, F1)),
    ("b2_sg",  (1, F1)),
    ("wh_lv",  (F1, 3 * HM)),             # [wm_lv | ws_lv | wp_lv]
    ("wh_s",   (3 * HM + F0, 3 * K)),     # [blkdiag(lsn) ; lss concat]
    ("wh_lv2", (3 * HM, 2 * K)),          # blkdiag(wm_lv2, ws_lv2); pi rows zero
    ("wh_sg",  (2 * K, 2 * K)),           # blkdiag(wm_sg, ws_sg)
    ("bh_sg",  (1, 2 * K)),               # [bm_sg | bs_sg]
]


def _round8(x):
    return (x + 7) // 8 * 8


WB_LAYOUT = {}
_off = 0
for _name, (_r, _c) in FUSED_SPECS:
    WB_LAYOUT[_name] = (_off, _r, _c)
    _off += _round8(_r)
WB_ROWS = _off   # 304


def _block_diag(*blocks):
    rows = sum(b.shape[0] for b in blocks)
    cols = sum(b.shape[1] for b in blocks)
    out = jnp.zeros((rows, cols), jnp.float32)
    r = c = 0
    for b in blocks:
        out = out.at[r:r + b.shape[0], c:c + b.shape[1]].set(b)
        r += b.shape[0]
        c += b.shape[1]
    return out


def pack_weights(p):
    """Fuse the 28 PyTorch parameters into 16 matrices, then pack them into a
    single (WB_ROWS, 32) buffer (each block at an 8-row-aligned offset)."""
    fused = {
        "w1_lv":  p["w1_lv"],
        "W1_s":   jnp.concatenate([p["w1_lsn"], p["w1_lss"]], axis=0),
        "w1_lv2": p["w1_lv2"],
        "w1_sg":  p["w1_sg"],
        "b1_sg":  p["b1_sg"],
        "w1_dir": p["w1_dir"],
        "w2_lv":  p["w2_lv"],
        "W2_s":   jnp.concatenate([p["w2_lsn"], p["w2_lss"]], axis=0),
        "w2_lv2": p["w2_lv2"],
        "w2_sg":  p["w2_sg"],
        "b2_sg":  p["b2_sg"],
        "wh_lv":  jnp.concatenate([p["wm_lv"], p["ws_lv"], p["wp_lv"]], axis=1),
        "wh_s":   jnp.concatenate(
            [_block_diag(p["wm_lsn"], p["ws_lsn"], p["wp_lsn"]),
             jnp.concatenate([p["wm_lss"], p["ws_lss"], p["wp_lss"]], axis=1)],
            axis=0),
        "wh_lv2": jnp.concatenate(
            [_block_diag(p["wm_lv2"], p["ws_lv2"]),
             jnp.zeros((HP, 2 * K), jnp.float32)], axis=0),
        "wh_sg":  _block_diag(p["wm_sg"], p["ws_sg"]),
        "bh_sg":  jnp.concatenate([p["bm_sg"], p["bs_sg"]], axis=1),
    }
    buf = jnp.zeros((WB_ROWS, WBUF_COLS), jnp.float32)
    for name, (off, r, c) in WB_LAYOUT.items():
        a = fused[name]
        assert a.shape == (r, c), (name, a.shape, (r, c))
        buf = buf.at[off:off + r, 0:c].set(a)
    return buf


# ------------------------------- the kernel ----------------------------------
def position_kernel(sca_ref, vec_ref, wbuf_ref, out_ref):
    T = N

    def w(name):
        off, r, c = WB_LAYOUT[name]
        return wbuf_ref[off:off + r, 0:c]

    def rep3(x):                       # (T,C) -> (3T,C) component broadcast
        return jnp.concatenate([x, x, x], axis=0)

    def comps(x):                      # (3T,C) -> per-component (T,C)
        return x[0:T], x[T:2 * T], x[2 * T:3 * T]

    def mm(a, b):
        return jnp.dot(a, b, preferred_element_type=jnp.float32)

    sca = sca_ref[...]                 # (T, 32)
    v0 = vec_ref[...]                  # (3T, 8)  component-major flat

    # ---- GVLinear #1 (inside GVPerceptronVN) ----
    inter1 = mm(v0, w("w1_lv"))                                   # (3T, 8)
    ix, iy, iz = comps(inter1)
    norm1 = jnp.sqrt(ix * ix + iy * iy + iz * iz)                 # (T, 8)
    s1 = mm(jnp.concatenate([norm1, sca], axis=1), w("W1_s"))     # (T, 32)
    outv1 = mm(inter1, w("w1_lv2"))                               # (3T, 8)
    gate1 = jax.nn.sigmoid(mm(s1, w("w1_sg")) + w("b1_sg"))       # (T, 8)
    v1 = outv1 * rep3(gate1)

    # ---- VNLeakyReLU (vector) + LeakyReLU (scalar) ----
    d = mm(v1, w("w1_dir"))                                       # (3T, 8)
    vx, vy, vz = comps(v1)
    dx, dy, dz = comps(d)
    dotp = vx * dx + vy * dy + vz * dz                            # (T, 8)
    dnsq = dx * dx + dy * dy + dz * dz
    neg = (dotp < 0.0).astype(jnp.float32)
    coef = (1.0 - LEAKY_SLOPE_VEC) * neg * dotp / (dnsq + EPS)    # (T, 8)
    v1 = v1 - rep3(coef) * d
    s1 = jnp.where(s1 >= 0.0, s1, LEAKY_SLOPE_SCA * s1)

    # ---- GVLinear #2 ----
    inter2 = mm(v1, w("w2_lv"))                                   # (3T, 8)
    jx, jy, jz = comps(inter2)
    norm2 = jnp.sqrt(jx * jx + jy * jy + jz * jz)                 # (T, 8)
    s2 = mm(jnp.concatenate([norm2, s1], axis=1), w("W2_s"))      # (T, 32)
    outv2 = mm(inter2, w("w2_lv2"))                               # (3T, 8)
    gate2 = jax.nn.sigmoid(mm(s2, w("w2_sg")) + w("b2_sg"))       # (T, 8)
    v2 = outv2 * rep3(gate2)

    # ---- fused heads: mu / logsigma / pi ----
    hin = mm(v2, w("wh_lv"))                                      # (3T, 24)
    hx, hy, hz = comps(hin)
    hnorm = jnp.sqrt(hx * hx + hy * hy + hz * hz)                 # (T, 24)
    hsca = mm(jnp.concatenate([hnorm, s2], axis=1), w("wh_s"))    # (T, 12)
    hvec = mm(hin, w("wh_lv2"))                                   # (3T, 8)
    hgate = jax.nn.sigmoid(mm(hsca[:, 0:2 * K], w("wh_sg")) + w("bh_sg"))  # (T, 8)
    hvec = hvec * rep3(hgate)          # cols 0:K = rel_mu, K:2K = logsigma

    # softmax over pi logits + exp(logsigma), batched into one exp
    pil = hsca[:, 2 * K:3 * K]                                    # (T, K)
    z = pil - jnp.max(pil, axis=1, keepdims=True)
    ecat = jnp.exp(jnp.concatenate([hvec[:, K:2 * K], z], axis=0))  # (4T, K)
    sigma_flat = ecat[0:3 * T]                                    # (3T, K)
    ez = ecat[3 * T:4 * T]                                        # (T, K)
    pi = ez * pl.reciprocal(jnp.sum(ez, axis=1, keepdims=True), approx=True)

    rel_mu = hvec[:, 0:K]                                         # (3T, K)
    rx, ry, rz = comps(rel_mu)
    sx, sy, sz = comps(sigma_flat)

    # single lane-dense output slab: [mu_x|mu_y|mu_z|sig_x|sig_y|sig_z|pi]
    out_ref[...] = jnp.concatenate([rx, ry, rz, sx, sy, sz, pi], axis=1)


# ------------------------------- wrapper --------------------------------------
def position_predictor_forward(h_sca, h_vec, pos_focal, params):
    """h_sca: (N, in_sca), h_vec: (N, in_vec, 3), pos_focal: (N, 3) — PyTorch layout."""
    n, _ = h_sca.shape
    # component-major flat vector features: rows [0:N]=x, [N:2N]=y, [2N:3N]=z
    vec_flat = jnp.transpose(h_vec, (2, 0, 1)).reshape(3 * n, IN_VEC)
    wbuf = pack_weights(params)

    out = pl.pallas_call(
        position_kernel,
        out_shape=jax.ShapeDtypeStruct((n, 7 * K), jnp.float32),
    )(h_sca.astype(jnp.float32), vec_flat.astype(jnp.float32), wbuf)

    rel_mu = out[:, 0:3 * K].reshape(n, 3, K).transpose(0, 2, 1)      # (N, K, 3)
    sigma = out[:, 3 * K:6 * K].reshape(n, 3, K).transpose(0, 2, 1)   # (N, K, 3)
    pi = out[:, 6 * K:7 * K]                                          # (N, K)
    abs_mu = rel_mu + pos_focal[:, None, :]                           # wrapper-side add
    return rel_mu, abs_mu, sigma, pi


# --------------------------- pure-JAX reference --------------------------------
_HI = jax.lax.Precision.HIGHEST


def _ref_gvlinear(sca, vec, w_lv, w_lsn, w_lss, w_lv2, w_sg, b_sg):
    inter = jnp.einsum('nic,ih->nhc', vec, w_lv, precision=_HI)
    norm = jnp.sqrt(jnp.sum(inter * inter, axis=-1))
    out_sca = (jnp.dot(norm, w_lsn, precision=_HI)
               + jnp.dot(sca, w_lss, precision=_HI))
    out_vec = jnp.einsum('nhc,ho->noc', inter, w_lv2, precision=_HI)
    gate = jax.nn.sigmoid(jnp.dot(out_sca, w_sg, precision=_HI) + b_sg)
    return out_sca, out_vec * gate[:, :, None]


def _ref_vn_leaky(vec, w_dir):
    d = jnp.einsum('nic,io->noc', vec, w_dir, precision=_HI)
    dotp = jnp.sum(vec * d, axis=-1, keepdims=True)
    mask = (dotp >= 0.0).astype(vec.dtype)
    dsq = jnp.sum(d * d, axis=-1, keepdims=True)
    kept = mask * vec + (1.0 - mask) * (vec - (dotp / (dsq + EPS)) * d)
    return LEAKY_SLOPE_VEC * vec + (1.0 - LEAKY_SLOPE_VEC) * kept


def ref_forward(h_sca, h_vec, pos, p):
    s1, v1 = _ref_gvlinear(h_sca, h_vec, p["w1_lv"], p["w1_lsn"], p["w1_lss"],
                           p["w1_lv2"], p["w1_sg"], p["b1_sg"])
    v1 = _ref_vn_leaky(v1, p["w1_dir"])
    s1 = jnp.where(s1 >= 0.0, s1, LEAKY_SLOPE_SCA * s1)
    s2, v2 = _ref_gvlinear(s1, v1, p["w2_lv"], p["w2_lsn"], p["w2_lss"],
                           p["w2_lv2"], p["w2_sg"], p["b2_sg"])
    _, rel_mu = _ref_gvlinear(s2, v2, p["wm_lv"], p["wm_lsn"], p["wm_lss"],
                              p["wm_lv2"], p["wm_sg"], p["bm_sg"])
    _, logsig = _ref_gvlinear(s2, v2, p["ws_lv"], p["ws_lsn"], p["ws_lss"],
                              p["ws_lv2"], p["ws_sg"], p["bs_sg"])
    interp = jnp.einsum('nic,ih->nhc', v2, p["wp_lv"], precision=_HI)
    normp = jnp.sqrt(jnp.sum(interp * interp, axis=-1))
    pi_logits = (jnp.dot(normp, p["wp_lsn"], precision=_HI)
                 + jnp.dot(s2, p["wp_lss"], precision=_HI))
    pi = jax.nn.softmax(pi_logits, axis=1)
    sigma = jnp.exp(logsig)
    abs_mu = rel_mu + pos[:, None, :]
    return rel_mu, abs_mu, sigma, pi


# ------------------------------- params / main ---------------------------------
def init_params(key):
    params = {}
    keys = jax.random.split(key, NUM_PARAMS)
    for k, (name, shape, fan_in) in zip(keys, PARAM_SPECS):
        bound = 1.0 / math.sqrt(fan_in)
        params[name] = jax.random.uniform(k, shape, jnp.float32, -bound, bound)
    return params


if __name__ == "__main__":
    root = jax.random.PRNGKey(0)
    kp, k1, k2, k3 = jax.random.split(root, 4)
    params = init_params(kp)
    h_sca = jax.random.normal(k1, (N, IN_SCA), jnp.float32)
    h_vec = jax.random.normal(k2, (N, IN_VEC, 3), jnp.float32)
    pos_focal = jax.random.normal(k3, (N, 3), jnp.float32)

    rel_mu, abs_mu, sigma, pi = position_predictor_forward(h_sca, h_vec, pos_focal, params)
    jax.block_until_ready((rel_mu, abs_mu, sigma, pi))

    r_rel, r_abs, r_sig, r_pi = ref_forward(h_sca, h_vec, pos_focal, params)
    ok = (jnp.allclose(rel_mu, r_rel, atol=1e-3, rtol=1e-3)
          and jnp.allclose(abs_mu, r_abs, atol=1e-3, rtol=1e-3)
          and jnp.allclose(sigma, r_sig, atol=1e-3, rtol=1e-3)
          and jnp.allclose(pi, r_pi, atol=1e-3, rtol=1e-3))
    assert bool(ok), "Pallas kernel does not match JAX reference"
    assert rel_mu.shape == (N, K, 3) and abs_mu.shape == (N, K, 3)
    assert sigma.shape == (N, K, 3) and pi.shape == (N, K)
    print("KERNEL_OK")
</pallas_src>

<mosaic_0001>
module attributes {stable_mosaic.version = 11 : i64} {
  func.func @position_kernel(%arg0: memref<16x32xf32, #tpu.memory_space<vmem>>, %arg1: memref<48x8xf32, #tpu.memory_space<vmem>>, %arg2: memref<304x32xf32, #tpu.memory_space<vmem>>, %arg3: memref<16x28xf32, #tpu.memory_space<vmem>>) attributes {dimension_semantics = [], scalar_prefetch = 0 : i64, scratch_operands = 0 : i64, tpu.core_type = #tpu.core_type<tc>} {
    %c0 = arith.constant 0 : index
    %c0_0 = arith.constant 0 : index
    %0 = vector.load %arg0[%c0, %c0_0] : memref<16x32xf32, #tpu.memory_space<vmem>>, vector<16x32xf32>
    %c0_1 = arith.constant 0 : index
    %c0_2 = arith.constant 0 : index
    %1 = vector.load %arg1[%c0_1, %c0_2] : memref<48x8xf32, #tpu.memory_space<vmem>>, vector<48x8xf32>
    %c0_3 = arith.constant 0 : index
    %c0_4 = arith.constant 0 : index
    %2 = vector.load %arg2[%c0_3, %c0_4] : memref<304x32xf32, #tpu.memory_space<vmem>>, vector<8x8xf32>
    %cst = arith.constant dense<0.000000e+00> : vector<48x8xf32>
    %3 = tpu.matmul %1, %2, %cst {dimension_numbers = #tpu.dot_dimension_numbers<[1], [0], [0], [1], [0, 0, 1, 1], [], []>} : vector<48x8xf32>, vector<8x8xf32>, vector<48x8xf32> -> vector<48x8xf32>
    %4 = vector.extract_strided_slice %3 {offsets = [0, 0], sizes = [16, 8], strides = [1, 1]} : vector<48x8xf32> to vector<16x8xf32>
    %5 = vector.extract_strided_slice %3 {offsets = [16, 0], sizes = [16, 8], strides = [1, 1]} : vector<48x8xf32> to vector<16x8xf32>
    %6 = vector.extract_strided_slice %3 {offsets = [32, 0], sizes = [16, 8], strides = [1, 1]} : vector<48x8xf32> to vector<16x8xf32>
    %7 = arith.mulf %4, %4 : vector<16x8xf32>
    %8 = arith.mulf %5, %5 : vector<16x8xf32>
    %9 = arith.addf %7, %8 : vector<16x8xf32>
    %10 = arith.mulf %6, %6 : vector<16x8xf32>
    %11 = arith.addf %9, %10 : vector<16x8xf32>
    %12 = math.sqrt %11 : vector<16x8xf32>
    %13 = tpu.concatenate %12, %0 in 1 : vector<16x8xf32>, vector<16x32xf32> -> vector<16x40xf32>
    %c8 = arith.constant 8 : index
    %c0_5 = arith.constant 0 : index
    %14 = vector.load %arg2[%c8, %c0_5] : memref<304x32xf32, #tpu.memory_space<vmem>>, vector<40x32xf32>
    %cst_6 = arith.constant dense<0.000000e+00> : vector<16x32xf32>
    %15 = tpu.matmul %13, %14, %cst_6 {dimension_numbers = #tpu.dot_dimension_numbers<[1], [0], [0], [1], [0, 0, 1, 1], [], []>} : vector<16x40xf32>, vector<40x32xf32>, vector<16x32xf32> -> vector<16x32xf32>
    %c48 = arith.constant 48 : index
    %c0_7 = arith.constant 0 : index
    %16 = vector.load %arg2[%c48, %c0_7] : memref<304x32xf32, #tpu.memory_space<vmem>>, vector<8x8xf32>
    %cst_8 = arith.constant dense<0.000000e+00> : vector<48x8xf32>
    %17 = tpu.matmul %3, %16, %cst_8 {dimension_numbers = #tpu.dot_dimension_numbers<[1], [0], [0], [1], [0, 0, 1, 1], [], []>} : vector<48x8xf32>, vector<8x8xf32>, vector<48x8xf32> -> vector<48x8xf32>
    %c56 = arith.constant 56 : index
    %c0_9 = arith.constant 0 : index
    %18 = vector.load %arg2[%c56, %c0_9] : memref<304x32xf32, #tpu.memory_space<vmem>>, vector<32x8xf32>
    %cst_10 = arith.constant dense<0.000000e+00> : vector<16x8xf32>
    %19 = tpu.matmul %15, %18, %cst_10 {dimension_numbers = #tpu.dot_dimension_numbers<[1], [0], [0], [1], [0, 0, 1, 1], [], []>} : vector<16x32xf32>, vector<32x8xf32>, vector<16x8xf32> -> vector<16x8xf32>
    %c88 = arith.constant 88 : index
    %c0_11 = arith.constant 0 : index
    %20 = vector.load %arg2[%c88, %c0_11] : memref<304x32xf32, #tpu.memory_space<vmem>>, vector<1x8xf32>
    %21 = vector.broadcast %20 : vector<1x8xf32> to vector<16x8xf32>
    %22 = arith.addf %19, %21 : vector<16x8xf32>
    %23 = arith.negf %22 : vector<16x8xf32>
    %24 = math.exp %23 : vector<16x8xf32>
    %cst_12 = arith.constant 1.000000e+00 : f32
    %25 = vector.broadcast %cst_12 : f32 to vector<16x8xf32>
    %26 = arith.addf %25, %24 : vector<16x8xf32>
    %27 = arith.divf %25, %26 : vector<16x8xf32>
    %28 = tpu.concatenate %27, %27, %27 in 0 : vector<16x8xf32>, vector<16x8xf32>, vector<16x8xf32> -> vector<48x8xf32>
    %29 = arith.mulf %17, %28 : vector<48x8xf32>
    %c96 = arith.constant 96 : index
    %c0_13 = arith.constant 0 : index
    %30 = vector.load %arg2[%c96, %c0_13] : memref<304x32xf32, #tpu.memory_space<vmem>>, vector<8x8xf32>
    %cst_14 = arith.constant dense<0.000000e+00> : vector<48x8xf32>
    %31 = tpu.matmul %29, %30, %cst_14 {dimension_numbers = #tpu.dot_dimension_numbers<[1], [0], [0], [1], [0, 0, 1, 1], [], []>} : vector<48x8xf32>, vector<8x8xf32>, vector<48x8xf32> -> vector<48x8xf32>
    %32 = vector.extract_strided_slice %29 {offsets = [0, 0], sizes = [16, 8], strides = [1, 1]} : vector<48x8xf32> to vector<16x8xf32>
    %33 = vector.extract_strided_slice %29 {offsets = [16, 0], sizes = [16, 8], strides = [1, 1]} : vector<48x8xf32> to vector<16x8xf32>
    %34 = vector.extract_strided_slice %29 {offsets = [32, 0], sizes = [16, 8], strides = [1, 1]} : vector<48x8xf32> to vector<16x8xf32>
    %35 = vector.extract_strided_slice %31 {offsets = [0, 0], sizes = [16, 8], strides = [1, 1]} : vector<48x8xf32> to vector<16x8xf32>
    %36 = vector.extract_strided_slice %31 {offsets = [16, 0], sizes = [16, 8], strides = [1, 1]} : vector<48x8xf32> to vector<16x8xf32>
    %37 = vector.extract_strided_slice %31 {offsets = [32, 0], sizes = [16, 8], strides = [1, 1]} : vector<48x8xf32> to vector<16x8xf32>
    %38 = arith.mulf %32, %35 : vector<16x8xf32>
    %39 = arith.mulf %33, %36 : vector<16x8xf32>
    %40 = arith.addf %38, %39 : vector<16x8xf32>
    %41 = arith.mulf %34, %37 : vector<16x8xf32>
    %42 = arith.addf %40, %41 : vector<16x8xf32>
    %43 = arith.mulf %35, %35 : vector<16x8xf32>
    %44 = arith.mulf %36, %36 : vector<16x8xf32>
    %45 = arith.addf %43, %44 : vector<16x8xf32>
    %46 = arith.mulf %37, %37 : vector<16x8xf32>
    %47 = arith.addf %45, %46 : vector<16x8xf32>
    %cst_15 = arith.constant 0.000000e+00 : f32
    %48 = vector.broadcast %cst_15 : f32 to vector<16x8xf32>
    %49 = arith.cmpf olt, %42, %48 : vector<16x8xf32>
    %50 = arith.extui %49 : vector<16x8xi1> to vector<16x8xi32>
    %51 = arith.sitofp %50 : vector<16x8xi32> to vector<16x8xf32>
    %cst_16 = arith.constant 8.000000e-01 : f32
    %52 = vector.broadcast %cst_16 : f32 to vector<16x8xf32>
    %53 = arith.mulf %52, %51 : vector<16x8xf32>
    %54 = arith.mulf %53, %42 : vector<16x8xf32>
    %cst_17 = arith.constant 9.99999997E-7 : f32
    %55 = vector.broadcast %cst_17 : f32 to vector<16x8xf32>
    %56 = arith.addf %47, %55 : vector<16x8xf32>
    %57 = arith.divf %54, %56 : vector<16x8xf32>
    %58 = tpu.concatenate %57, %57, %57 in 0 : vector<16x8xf32>, vector<16x8xf32>, vector<16x8xf32> -> vector<48x8xf32>
    %59 = arith.mulf %58, %31 : vector<48x8xf32>
    %60 = arith.subf %29, %59 : vector<48x8xf32>
    %cst_18 = arith.constant 0.000000e+00 : f32
    %61 = vector.broadcast %cst_18 : f32 to vector<16x32xf32>
    %62 = arith.cmpf oge, %15, %61 : vector<16x32xf32>
    %cst_19 = arith.constant 0.00999999977 : f32
    %63 = vector.broadcast %cst_19 : f32 to vector<16x32xf32>
    %64 = arith.mulf %63, %15 : vector<16x32xf32>
    %65 = arith.select %62, %15, %64 : vector<16x32xi1>, vector<16x32xf32>
    %c104 = arith.constant 104 : index
    %c0_20 = arith.constant 0 : index
    %66 = vector.load %arg2[%c104, %c0_20] : memref<304x32xf32, #tpu.memory_space<vmem>>, vector<8x8xf32>
    %cst_21 = arith.constant dense<0.000000e+00> : vector<48x8xf32>
    %67 = tpu.matmul %60, %66, %cst_21 {dimension_numbers = #tpu.dot_dimension_numbers<[1], [0], [0], [1], [0, 0, 1, 1], [], []>} : vector<48x8xf32>, vector<8x8xf32>, vector<48x8xf32> -> vector<48x8xf32>
    %68 = vector.extract_strided_slice %67 {offsets = [0, 0], sizes = [16, 8], strides = [1, 1]} : vector<48x8xf32> to vector<16x8xf32>
    %69 = vector.extract_strided_slice %67 {offsets = [16, 0], sizes = [16, 8], strides = [1, 1]} : vector<48x8xf32> to vector<16x8xf32>
    %70 = vector.extract_strided_slice %67 {offsets = [32, 0], sizes = [16, 8], strides = [1, 1]} : vector<48x8xf32> to vector<16x8xf32>
    %71 = arith.mulf %68, %68 : vector<16x8xf32>
    %72 = arith.mulf %69, %69 : vector<16x8xf32>
    %73 = arith.addf %71, %72 : vector<16x8xf32>
    %74 = arith.mulf %70, %70 : vector<16x8xf32>
    %75 = arith.addf %73, %74 : vector<16x8xf32>
    %76 = math.sqrt %75 : vector<16x8xf32>
    %77 = tpu.concatenate %76, %65 in 1 : vector<16x8xf32>, vector<16x32xf32> -> vector<16x40xf32>
    %c112 = arith.constant 112 : index
    %c0_22 = arith.constant 0 : index
    %78 = vector.load %arg2[%c112, %c0_22] : memref<304x32xf32, #tpu.memory_space<vmem>>, vector<40x32xf32>
    %cst_23 = arith.constant dense<0.000000e+00> : vector<16x32xf32>
    %79 = tpu.matmul %77, %78, %cst_23 {dimension_numbers = #tpu.dot_dimension_numbers<[1], [0], [0], [1], [0, 0, 1, 1], [], []>} : vector<16x40xf32>, vector<40x32xf32>, vector<16x32xf32> -> vector<16x32xf32>
    %c152 = arith.constant 152 : index
    %c0_24 = arith.constant 0 : index
    %80 = vector.load %arg2[%c152, %c0_24] : memref<304x32xf32, #tpu.memory_space<vmem>>, vector<8x8xf32>
    %cst_25 = arith.constant dense<0.000000e+00> : vector<48x8xf32>
    %81 = tpu.matmul %67, %80, %cst_25 {dimension_numbers = #tpu.dot_dimension_numbers<[1], [0], [0], [1], [0, 0, 1, 1], [], []>} : vector<48x8xf32>, vector<8x8xf32>, vector<48x8xf32> -> vector<48x8xf32>
    %c160 = arith.constant 160 : index
    %c0_26 = arith.constant 0 : index
    %82 = vector.load %arg2[%c160, %c0_26] : memref<304x32xf32, #tpu.memory_space<vmem>>, vector<32x8xf32>
    %cst_27 = arith.constant dense<0.000000e+00> : vector<16x8xf32>
    %83 = tpu.matmul %79, %82, %cst_27 {dimension_numbers = #tpu.dot_dimension_numbers<[1], [0], [0], [1], [0, 0, 1, 1], [], []>} : vector<16x32xf32>, vector<32x8xf32>, vector<16x8xf32> -> vector<16x8xf32>
    %c192 = arith.constant 192 : index
    %c0_28 = arith.constant 0 : index
    %84 = vector.load %arg2[%c192, %c0_28] : memref<304x32xf32, #tpu.memory_space<vmem>>, vector<1x8xf32>
    %85 = vector.broadcast %84 : vector<1x8xf32> to vector<16x8xf32>
    %86 = arith.addf %83, %85 : vector<16x8xf32>
    %87 = arith.negf %86 : vector<16x8xf32>
    %88 = math.exp %87 : vector<16x8xf32>
    %cst_29 = arith.constant 1.000000e+00 : f32
    %89 = vector.broadcast %cst_29 : f32 to vector<16x8xf32>
    %90 = arith.addf %89, %88 : vector<16x8xf32>
    %91 = arith.divf %89, %90 : vector<16x8xf32>
    %92 = tpu.concatenate %91, %91, %91 in 0 : vector<16x8xf32>, vector<16x8xf32>, vector<16x8xf32> -> vector<48x8xf32>
    %93 = arith.mulf %81, %92 : vector<48x8xf32>
    %c200 = arith.constant 200 : index
    %c0_30 = arith.constant 0 : index
    %94 = vector.load %arg2[%c200, %c0_30] : memref<304x32xf32, #tpu.memory_space<vmem>>, vector<8x24xf32>
    %cst_31 = arith.constant dense<0.000000e+00> : vector<48x24xf32>
    %95 = tpu.matmul %93, %94, %cst_31 {dimension_numbers = #tpu.dot_dimension_numbers<[1], [0], [0], [1], [0, 0, 1, 1], [], []>} : vector<48x8xf32>, vector<8x24xf32>, vector<48x24xf32> -> vector<48x24xf32>
    %96 = vector.extract_strided_slice %95 {offsets = [0, 0], sizes = [16, 24], strides = [1, 1]} : vector<48x24xf32> to vector<16x24xf32>
    %97 = vector.extract_strided_slice %95 {offsets = [16, 0], sizes = [16, 24], strides = [1, 1]} : vector<48x24xf32> to vector<16x24xf32>
    %98 = vector.extract_strided_slice %95 {offsets = [32, 0], sizes = [16, 24], strides = [1, 1]} : vector<48x24xf32> to vector<16x24xf32>
    %99 = arith.mulf %96, %96 : vector<16x24xf32>
    %100 = arith.mulf %97, %97 : vector<16x24xf32>
    %101 = arith.addf %99, %100 : vector<16x24xf32>
    %102 = arith.mulf %98, %98 : vector<16x24xf32>
    %103 = arith.addf %101, %102 : vector<16x24xf32>
    %104 = math.sqrt %103 : vector<16x24xf32>
    %105 = tpu.concatenate %104, %79 in 1 : vector<16x24xf32>, vector<16x32xf32> -> vector<16x56xf32>
    %c208 = arith.constant 208 : index
    %c0_32 = arith.constant 0 : index
    %106 = vector.load %arg2[%c208, %c0_32] : memref<304x32xf32, #tpu.memory_space<vmem>>, vector<56x12xf32>
    %cst_33 = arith.constant dense<0.000000e+00> : vector<16x12xf32>
    %107 = tpu.matmul %105, %106, %cst_33 {dimension_numbers = #tpu.dot_dimension_numbers<[1], [0], [0], [1], [0, 0, 1, 1], [], []>} : vector<16x56xf32>, vector<56x12xf32>, vector<16x12xf32> -> vector<16x12xf32>
    %c264 = arith.constant 264 : index
    %c0_34 = arith.constant 0 : index
    %108 = vector.load %arg2[%c264, %c0_34] : memref<304x32xf32, #tpu.memory_space<vmem>>, vector<24x8xf32>
    %cst_35 = arith.constant dense<0.000000e+00> : vector<48x8xf32>
    %109 = tpu.matmul %95, %108, %cst_35 {dimension_numbers = #tpu.dot_dimension_numbers<[1], [0], [0], [1], [0, 0, 1, 1], [], []>} : vector<48x24xf32>, vector<24x8xf32>, vector<48x8xf32> -> vector<48x8xf32>
    %110 = vector.extract_strided_slice %107 {offsets = [0, 0], sizes = [16, 8], strides = [1, 1]} : vector<16x12xf32> to vector<16x8xf32>
    %c288 = arith.constant 288 : index
    %c0_36 = arith.constant 0 : index
    %111 = vector.load %arg2[%c288, %c0_36] : memref<304x32xf32, #tpu.memory_space<vmem>>, vector<8x8xf32>
    %cst_37 = arith.constant dense<0.000000e+00> : vector<16x8xf32>
    %112 = tpu.matmul %110, %111, %cst_37 {dimension_numbers = #tpu.dot_dimension_numbers<[1], [0], [0], [1], [0, 0, 1, 1], [], []>} : vector<16x8xf32>, vector<8x8xf32>, vector<16x8xf32> -> vector<16x8xf32>
    %c296 = arith.constant 296 : index
    %c0_38 = arith.constant 0 : index
    %113 = vector.load %arg2[%c296, %c0_38] : memref<304x32xf32, #tpu.memory_space<vmem>>, vector<1x8xf32>
    %114 = vector.broadcast %113 : vector<1x8xf32> to vector<16x8xf32>
    %115 = arith.addf %112, %114 : vector<16x8xf32>
    %116 = arith.negf %115 : vector<16x8xf32>
    %117 = math.exp %116 : vector<16x8xf32>
    %cst_39 = arith.constant 1.000000e+00 : f32
    %118 = vector.broadcast %cst_39 : f32 to vector<16x8xf32>
    %119 = arith.addf %118, %117 : vector<16x8xf32>
    %120 = arith.divf %118, %119 : vector<16x8xf32>
    %121 = tpu.concatenate %120, %120, %120 in 0 : vector<16x8xf32>, vector<16x8xf32>, vector<16x8xf32> -> vector<48x8xf32>
    %122 = arith.mulf %109, %121 : vector<48x8xf32>
    %123 = vector.extract_strided_slice %107 {offsets = [0, 8], sizes = [16, 4], strides = [1, 1]} : vector<16x12xf32> to vector<16x4xf32>
    %cst_40 = arith.constant dense<0xFF800000> : vector<16xf32>
    %124 = vector.multi_reduction <maximumf>, %123, %cst_40 [1] : vector<16x4xf32> to vector<16xf32>
    %125 = vector.shape_cast %124 : vector<16xf32> to vector<16x1xf32>
    %126 = vector.broadcast %125 : vector<16x1xf32> to vector<16x4xf32>
    %127 = arith.subf %123, %126 : vector<16x4xf32>
    %128 = vector.extract_strided_slice %122 {offsets = [0, 4], sizes = [48, 4], strides = [1, 1]} : vector<48x8xf32> to vector<48x4xf32>
    %129 = tpu.concatenate %128, %127 in 0 : vector<48x4xf32>, vector<16x4xf32> -> vector<64x4xf32>
    %130 = math.exp %129 : vector<64x4xf32>
    %131 = vector.extract_strided_slice %130 {offsets = [0, 0], sizes = [48, 4], strides = [1, 1]} : vector<64x4xf32> to vector<48x4xf32>
    %132 = vector.extract_strided_slice %130 {offsets = [48, 0], sizes = [16, 4], strides = [1, 1]} : vector<64x4xf32> to vector<16x4xf32>
    %cst_41 = arith.constant dense<0.000000e+00> : vector<16xf32>
    %133 = vector.multi_reduction <add>, %132, %cst_41 [1] : vector<16x4xf32> to vector<16xf32>
    %134 = vector.shape_cast %133 : vector<16xf32> to vector<16x1xf32>
    %135 = tpu.reciprocal %134 {approx = true} : vector<16x1xf32> -> vector<16x1xf32>
    %136 = vector.broadcast %135 : vector<16x1xf32> to vector<16x4xf32>
    %137 = arith.mulf %132, %136 : vector<16x4xf32>
    %138 = vector.extract_strided_slice %122 {offsets = [0, 0], sizes = [48, 4], strides = [1, 1]} : vector<48x8xf32> to vector<48x4xf32>
    %139 = vector.extract_strided_slice %138 {offsets = [0, 0], sizes = [16, 4], strides = [1, 1]} : vector<48x4xf32> to vector<16x4xf32>
    %140 = vector.extract_strided_slice %138 {offsets = [16, 0], sizes = [16, 4], strides = [1, 1]} : vector<48x4xf32> to vector<16x4xf32>
    %141 = vector.extract_strided_slice %138 {offsets = [32, 0], sizes = [16, 4], strides = [1, 1]} : vector<48x4xf32> to vector<16x4xf32>
    %142 = vector.extract_strided_slice %131 {offsets = [0, 0], sizes = [16, 4], strides = [1, 1]} : vector<48x4xf32> to vector<16x4xf32>
    %143 = vector.extract_strided_slice %131 {offsets = [16, 0], sizes = [16, 4], strides = [1, 1]} : vector<48x4xf32> to vector<16x4xf32>
    %144 = vector.extract_strided_slice %131 {offsets = [32, 0], sizes = [16, 4], strides = [1, 1]} : vector<48x4xf32> to vector<16x4xf32>
    %145 = tpu.concatenate %139, %140, %141, %142, %143, %144, %137 in 1 : vector<16x4xf32>, vector<16x4xf32>, vector<16x4xf32>, vector<16x4xf32>, vector<16x4xf32>, vector<16x4xf32>, vector<16x4xf32> -> vector<16x28xf32>
    %c0_42 = arith.constant 0 : index
    %c0_43 = arith.constant 0 : index
    %146 = vector.load %arg3[%c0_42, %c0_43] : memref<16x28xf32, #tpu.memory_space<vmem>>, vector<16x28xf32>
    tpu.vector_store %arg3[%c0_42, %c0_43], %145 {strides = array<i32>} : memref<16x28xf32, #tpu.memory_space<vmem>>, vector<16x28xf32>,
    return
  }
}

</mosaic_0001>

<llo_original>
// kernel: tpu_custom_call.1
$region0: #{tpu_custom_call.1}
  #allocation0 [shape = 'u32[]', space=smem, size = 0x4, offset = 0x4, fixed_abs, tag = 'smem constant byte address 0x4 - core index']
  #allocation1 [shape = 'u32[144,128]{1,0:T(1,128)}', space=vmem, size = 0x12000, scoped, tag = 'internal scratch']
  %s0 = inlined_call_operand.vmem [shape: f32[16,32], index: 0, kind: input, shape index: {}]
  %s1 = inlined_call_operand.vmem [shape: f32[48,8], index: 1, kind: input, shape index: {}]
  %s2 = inlined_call_operand.vmem [shape: f32[304,32], index: 2, kind: input, shape index: {}]
  %s3 = inlined_call_operand.hbm [shape: f32[16,28], index: 3, kind: output, shape index: {}]
  %s4 = sld [smem:[#allocation0]]
  $region22: #{tpu_custom_call.1} parent=0
    _
  %s6 = ssub.s32 1, %s4
  %s7 = scalar_select 0, %s6, %s4
  $region1: #{tpu_custom_call.1} parent=0
    #allocation2 [shape = 'u8[8192]{0}', space=vmem, size = 0x2000, scoped, tag = 'output window, operand 0, single buffered']
    #allocation3 [shape = 's32[1]{0}', space=sflag, size = 0x4, scoped, tag = 'scoped memory for tpu_custom_call.1']
    %8 = vsyncpa [#allocation3], 0
    // Predicated region
    $region2: #{tpu_custom_call.1} parent=1 // pred_check
      _
    $region3: #{tpu_custom_call.1} parent=1 // pred_check_branch
      %10 = sbr.rel (0) target = $region5
    $region4: #{tpu_custom_call.1} parent=1 // pred_region
      _
    $region5: #{tpu_custom_call.1} parent=1 // pred_fallthru
      _
    // Predicated region
    $region6: #{tpu_custom_call.1} parent=1 // pred_check
      _
    $region7: #{tpu_custom_call.1} parent=1 // pred_check_branch
      %12 = sbr.rel (0) target = $region9
    $region8: #{tpu_custom_call.1} parent=1 // pred_region
      _
    $region9: #{tpu_custom_call.1} parent=1 // pred_fallthru
      _
    // Predicated region
    $region10: #{tpu_custom_call.1} parent=1 // pred_check
      _
    $region11: #{tpu_custom_call.1} parent=1 // pred_check_branch
      %14 = sbr.rel (0) target = $region13
    $region12: #{tpu_custom_call.1} parent=1 // pred_region
      _
    $region13: #{tpu_custom_call.1} parent=1 // pred_fallthru
      _
    %v15 = vld [vmem:[%s0] sm:$0xff]
    %v16 = vld [vmem:[%s0 + $0x8] sm:$0xff]
    %v17 = vld [vmem:[%s1] sm:$0xff]
    %v18 = vld [vmem:[%s1 + $0x8] sm:$0xff]
    %v19 = vld [vmem:[%s1 + $0x10] sm:$0xff]
    %v20 = vld [vmem:[%s1 + $0x18] sm:$0xff]
    %v21 = vld [vmem:[%s1 + $0x20] sm:$0xff]
    %v22 = vld [vmem:[%s1 + $0x28] sm:$0xff]
    %v23 = vld [vmem:[%s2] sm:$0xff]
    %vm24 = vcmask 64512
    %v26 = vsel %vm24, %v17, 0
    %v29 = vsel %vm24, %v18, 0
    %v32 = vsel %vm24, %v19, 0
    %v35 = vsel %vm24, %v20, 0
    %v38 = vsel %vm24, %v21, 0
    %v41 = vsel %vm24, %v22, 0
    %43 = vmatprep.subr.mxu0 0.0
    %44 = vmatpush1.msra.mxu0 %v23
    %45 = vmatprep.subr.mxu0 0.0
    %46 = vmatpush1.msra.mxu0 0.0
    %47 = vmatprep.subr.mxu0 0.0
    %48 = vmatpush1.msra.mxu0 0.0
    %49 = vmatprep.subr.mxu0 0.0
    %50 = vmatpush1.msra.mxu0 0.0
    %51 = vmatprep.subr.mxu0 0.0
    %52 = vmatpush1.msra.mxu0 0.0
    %53 = vmatprep.subr.mxu0 0.0
    %54 = vmatpush1.msra.mxu0 0.0
    %55 = vmatprep.subr.mxu0 0.0
    %56 = vmatpush1.msra.mxu0 0.0
    %57 = vmatprep.subr.mxu0 0.0
    %58 = vmatpush1.msra.mxu0 0.0
    %59 = vmatprep.subr.mxu0 0.0
    %60 = vmatpush1.msra.mxu0 0.0
    %61 = vmatprep.subr.mxu0 0.0
    %62 = vmatpush1.msra.mxu0 0.0
    %63 = vmatprep.subr.mxu0 0.0
    %64 = vmatpush1.msra.mxu0 0.0
    %65 = vmatprep.subr.mxu0 0.0
    %66 = vmatpush1.msra.mxu0 0.0
    %67 = vmatprep.subr.mxu0 0.0
    %68 = vmatpush1.msra.mxu0 0.0
    %69 = vmatprep.subr.mxu0 0.0
    %70 = vmatpush1.msra.mxu0 0.0
    %71 = vmatprep.subr.mxu0 0.0
    %72 = vmatpush1.msra.mxu0 0.0
    %73 = vmatprep.subr.mxu0 0.0
    %74 = vmatpush1.msra.mxu0 0.0
    %75 = vmatprep.subr.mxu0 0.0
    %76 = vmatpush1.msra.mxu0 0.0
    %77 = vmatprep.subr.mxu0 0.0
    %78 = vmatpush1.msra.mxu0 0.0
    %79 = vmatprep.subr.mxu0 0.0
    %80 = vmatpush1.msra.mxu0 0.0
    %81 = vmatprep.subr.mxu0 0.0
    %82 = vmatpush1.msra.mxu0 0.0
    %83 = vmatprep.subr.mxu0 0.0
    %84 = vmatpush1.msra.mxu0 0.0
    %85 = vmatprep.subr.mxu0 0.0
    %86 = vmatpush1.msra.mxu0 0.0
    %87 = vmatprep.subr.mxu0 0.0
    %88 = vmatpush1.msra.mxu0 0.0
    %89 = vmatprep.subr.mxu0 0.0
    %90 = vmatpush1.msra.mxu0 0.0
    %91 = vmatprep.subr.mxu0 0.0
    %92 = vmatpush1.msra.mxu0 0.0
    %93 = vmatprep.subr.mxu0 0.0
    %94 = vmatpush1.msra.mxu0 0.0
    %95 = vmatprep.subr.mxu0 0.0
    %96 = vmatpush1.msra.mxu0 0.0
    %97 = vmatprep.subr.mxu0 0.0
    %98 = vmatpush1.msra.mxu0 0.0
    %99 = vmatprep.subr.mxu0 0.0
    %100 = vmatpush1.msra.mxu0 0.0
    %101 = vmatprep.subr.mxu0 0.0
    %102 = vmatpush1.msra.mxu0 0.0
    %103 = vmatprep.subr.mxu0 0.0
    %104 = vmatpush1.msra.mxu0 0.0
    %105 = vmatprep.subr.mxu0 0.0
    %106 = vmatpush1.msra.mxu0 0.0
    %107 = vmatprep.mubr.f32.mxu0 0.0
    %108 = vmatmul.mubr.f32.gmra.mrb[0].mxu0 %v26
    %v109 = vpop.f32.mrb[0].mxu0
    %v110 = vadd.f32 0.0, %v109
    %v111 = vpop.f32.mrb[0].mxu0
    %112 = vmatprep.mubr.f32.mxu0 0.0
    %113 = vmatmul.mubr.f32.gmra.mrb[0].mxu0 %v29
    %v114 = vpop.f32.mrb[0].mxu0
    %v115 = vadd.f32 0.0, %v114
    %v116 = vpop.f32.mrb[0].mxu0
    %117 = vmatprep.mubr.f32.mxu0 0.0
    %118 = vmatmul.mubr.f32.gmra.mrb[0].mxu0 %v32
    %v119 = vpop.f32.mrb[0].mxu0
    %v120 = vadd.f32 0.0, %v119
    %v121 = vpop.f32.mrb[0].mxu0
    %122 = vmatprep.mubr.f32.mxu0 0.0
    %123 = vmatmul.mubr.f32.gmra.mrb[0].mxu0 %v35
    %v124 = vpop.f32.mrb[0].mxu0
    %v125 = vadd.f32 0.0, %v124
    %v126 = vpop.f32.mrb[0].mxu0
    %127 = vmatprep.mubr.f32.mxu0 0.0
    %128 = vmatmul.mubr.f32.gmra.mrb[0].mxu0 %v38
    %v129 = vpop.f32.mrb[0].mxu0
    %v130 = vadd.f32 0.0, %v129
    %v131 = vpop.f32.mrb[0].mxu0
    %132 = vmatprep.mubr.f32.mxu0 0.0
    %133 = vmatmul.mubr.f32.gmra.mrb[0].mxu0 %v41
    %v134 = vpop.f32.mrb[0].mxu0
    %v135 = vadd.f32 0.0, %v134
    %v136 = vpop.f32.mrb[0].mxu0
    %137 = vdwg.mxu0
    %v138 = vmul.f32 %v110, %v110
    %v139 = vmul.f32 %v115, %v115
    %v140 = vmul.f32 %v120, %v120
    %v141 = vmul.f32 %v125, %v125
    %v142 = vadd.f32 %v138, %v140
    %v143 = vadd.f32 %v139, %v141
    %v144 = vmul.f32 %v130, %v130
    %v145 = vmul.f32 %v135, %v135
    %v146 = vadd.f32 %v142, %v144
    %v147 = vadd.f32 %v143, %v145
    %v148 = vrsqrt.pop %v146
    %v149 = vmul.f32 %v146, %v148
    %vm150 = vcmp.eq.f32.partialorder %v146, inf
    %v151 = vsel %vm150, %v146, %v149
    %vm152 = vcmp.eq.f32.partialorder %v146, 0.0
    %v153 = vand.u32 %v146, 2147483648
    %v154 = vsel %vm152, %v153, %v151
    %v155 = vrsqrt.pop %v147
    %v156 = vmul.f32 %v147, %v155
    %vm157 = vcmp.eq.f32.partialorder %v147, inf
    %v158 = vsel %vm157, %v147, %v156
    %vm159 = vcmp.eq.f32.partialorder %v147, 0.0
    %v160 = vand.u32 %v147, 2147483648
    %v161 = vsel %vm159, %v160, %v158
    %164 = vrot.lane.b32.xlu0 %v15, 8
    %v165 = vpop.permute.xlu0 %164
    %166 = vrot.lane.b32.xlu0 %v16, 8
    %v167 = vpop.permute.xlu0 %166
    %v170 = vsel %vm24, %v154, %v165
    %v171 = vsel %vm24, %v161, %v167
    %v172 = vld [vmem:[%s2 + $0x8] sm:$0xff]
    %v173 = vld [vmem:[%s2 + $0x10] sm:$0xff]
    %v174 = vld [vmem:[%s2 + $0x18] sm:$0xff]
    %v175 = vld [vmem:[%s2 + $0x20] sm:$0xff]
    %v176 = vld [vmem:[%s2 + $0x28] sm:$0xff]
    %vm177 = vcmask 326656
    %v179 = vsel %vm177, %v170, 0
    %v182 = vsel %vm177, %v171, 0
    %184 = vmatprep.subr.mxu0 0.0
    %185 = vmatpush1.msra.mxu0 %v172
    %186 = vmatprep.subr.mxu0 0.0
    %187 = vmatpush1.msra.mxu0 %v173
    %188 = vmatprep.subr.mxu0 0.0
    %189 = vmatpush1.msra.mxu0 %v174
    %190 = vmatprep.subr.mxu0 0.0
    %191 = vmatpush1.msra.mxu0 %v175
    %192 = vmatprep.subr.mxu0 0.0
    %193 = vmatpush1.msra.mxu0 %v176
    %194 = vmatprep.subr.mxu0 0.0
    %195 = vmatpush1.msra.mxu0 0.0
    %196 = vmatprep.subr.mxu0 0.0
    %197 = vmatpush1.msra.mxu0 0.0
    %198 = vmatprep.subr.mxu0 0.0
    %199 = vmatpush1.msra.mxu0 0.0
    %200 = vmatprep.subr.mxu0 0.0
    %201 = vmatpush1.msra.mxu0 0.0
    %202 = vmatprep.subr.mxu0 0.0
    %203 = vmatpush1.msra.mxu0 0.0
    %204 = vmatprep.subr.mxu0 0.0
    %205 = vmatpush1.msra.mxu0 0.0
    %206 = vmatprep.subr.mxu0 0.0
    %207 = vmatpush1.msra.mxu0 0.0
    %208 = vmatprep.subr.mxu0 0.0
    %209 = vmatpush1.msra.mxu0 0.0
    %210 = vmatprep.subr.mxu0 0.0
    %211 = vmatpush1.msra.mxu0 0.0
    %212 = vmatprep.subr.mxu0 0.0
    %213 = vmatpush1.msra.mxu0 0.0
    %214 = vmatprep.subr.mxu0 0.0
    %215 = vmatpush1.msra.mxu0 0.0
    %216 = vmatprep.subr.mxu0 0.0
    %217 = vmatpush1.msra.mxu0 0.0
    %218 = vmatprep.subr.mxu0 0.0
    %219 = vmatpush1.msra.mxu0 0.0
    %220 = vmatprep.subr.mxu0 0.0
    %221 = vmatpush1.msra.mxu0 0.0
    %222 = vmatprep.subr.mxu0 0.0
    %223 = vmatpush1.msra.mxu0 0.0
    %224 = vmatprep.subr.mxu0 0.0
    %225 = vmatpush1.msra.mxu0 0.0
    %226 = vmatprep.subr.mxu0 0.0
    %227 = vmatpush1.msra.mxu0 0.0
    %228 = vmatprep.subr.mxu0 0.0
    %229 = vmatpush1.msra.mxu0 0.0
    %230 = vmatprep.subr.mxu0 0.0
    %231 = vmatpush1.msra.mxu0 0.0
    %232 = vmatprep.subr.mxu0 0.0
    %233 = vmatpush1.msra.mxu0 0.0
    %234 = vmatprep.subr.mxu0 0.0
    %235 = vmatpush1.msra.mxu0 0.0
    %236 = vmatprep.subr.mxu0 0.0
    %237 = vmatpush1.msra.mxu0 0.0
    %238 = vmatprep.subr.mxu0 0.0
    %239 = vmatpush1.msra.mxu0 0.0
    %240 = vmatprep.subr.mxu0 0.0
    %241 = vmatpush1.msra.mxu0 0.0
    %242 = vmatprep.subr.mxu0 0.0
    %243 = vmatpush1.msra.mxu0 0.0
    %244 = vmatprep.subr.mxu0 0.0
    %245 = vmatpush1.msra.mxu0 0.0
    %246 = vmatprep.subr.mxu0 0.0
    %247 = vmatpush1.msra.mxu0 0.0
    %248 = vmatprep.mubr.f32.mxu0 0.0
    %249 = vmatmul.mubr.f32.gmra.mrb[0].mxu0 %v179
    %v250 = vpop.f32.mrb[0].mxu0
    %v251 = vadd.f32 0.0, %v250
    %v252 = vpop.f32.mrb[0].mxu0
    %253 = vmatprep.mubr.f32.mxu0 0.0
    %254 = vmatmul.mubr.f32.gmra.mrb[0].mxu0 %v182
    %v255 = vpop.f32.mrb[0].mxu0
    %v256 = vadd.f32 0.0, %v255
    %v257 = vpop.f32.mrb[0].mxu0
    %258 = vdwg.mxu0
    %v259 = vld [vmem:[%s2 + $0x30] sm:$0xff]
    %v261 = vsel %vm24, %v110, 0
    %v264 = vsel %vm24, %v115, 0
    %v267 = vsel %vm24, %v120, 0
    %v270 = vsel %vm24, %v125, 0
    %v273 = vsel %vm24, %v130, 0
    %v276 = vsel %vm24, %v135, 0
    %278 = vmatprep.subr.mxu0 0.0
    %279 = vmatpush1.msra.mxu0 %v259
    %280 = vmatprep.subr.mxu0 0.0
    %281 = vmatpush1.msra.mxu0 0.0
    %282 = vmatprep.subr.mxu0 0.0
    %283 = vmatpush1.msra.mxu0 0.0
    %284 = vmatprep.subr.mxu0 0.0
    %285 = vmatpush1.msra.mxu0 0.0
    %286 = vmatprep.subr.mxu0 0.0
    %287 = vmatpush1.msra.mxu0 0.0
    %288 = vmatprep.subr.mxu0 0.0
    %289 = vmatpush1.msra.mxu0 0.0
    %290 = vmatprep.subr.mxu0 0.0
    %291 = vmatpush1.msra.mxu0 0.0
    %292 = vmatprep.subr.mxu0 0.0
    %293 = vmatpush1.msra.mxu0 0.0
    %294 = vmatprep.subr.mxu0 0.0
    %295 = vmatpush1.msra.mxu0 0.0
    %296 = vmatprep.subr.mxu0 0.0
    %297 = vmatpush1.msra.mxu0 0.0
    %298 = vmatprep.subr.mxu0 0.0
    %299 = vmatpush1.msra.mxu0 0.0
    %300 = vmatprep.subr.mxu0 0.0
    %301 = vmatpush1.msra.mxu0 0.0
    %302 = vmatprep.subr.mxu0 0.0
    %303 = vmatpush1.msra.mxu0 0.0
    %304 = vmatprep.subr.mxu0 0.0
    %305 = vmatpush1.msra.mxu0 0.0
    %306 = vmatprep.subr.mxu0 0.0
    %307 = vmatpush1.msra.mxu0 0.0
    %308 = vmatprep.subr.mxu0 0.0
    %309 = vmatpush1.msra.mxu0 0.0
    %310 = vmatprep.subr.mxu0 0.0
    %311 = vmatpush1.msra.mxu0 0.0
    %312 = vmatprep.subr.mxu0 0.0
    %313 = vmatpush1.msra.mxu0 0.0
    %314 = vmatprep.subr.mxu0 0.0
    %315 = vmatpush1.msra.mxu0 0.0
    %316 = vmatprep.subr.mxu0 0.0
    %317 = vmatpush1.msra.mxu0 0.0
    %318 = vmatprep.subr.mxu0 0.0
    %319 = vmatpush1.msra.mxu0 0.0
    %320 = vmatprep.subr.mxu0 0.0
    %321 = vmatpush1.msra.mxu0 0.0
    %322 = vmatprep.subr.mxu0 0.0
    %323 = vmatpush1.msra.mxu0 0.0
    %324 = vmatprep.subr.mxu0 0.0
    %325 = vmatpush1.msra.mxu0 0.0
    %326 = vmatprep.subr.mxu0 0.0
    %327 = vmatpush1.msra.mxu0 0.0
    %328 = vmatprep.subr.mxu0 0.0
    %329 = vmatpush1.msra.mxu0 0.0
    %330 = vmatprep.subr.mxu0 0.0
    %331 = vmatpush1.msra.mxu0 0.0
    %332 = vmatprep.subr.mxu0 0.0
    %333 = vmatpush1.msra.mxu0 0.0
    %334 = vmatprep.subr.mxu0 0.0
    %335 = vmatpush1.msra.mxu0 0.0
    %336 = vmatprep.subr.mxu0 0.0
    %337 = vmatpush1.msra.mxu0 0.0
    %338 = vmatprep.subr.mxu0 0.0
    %339 = vmatpush1.msra.mxu0 0.0
    %340 = vmatprep.subr.mxu0 0.0
    %341 = vmatpush1.msra.mxu0 0.0
    %342 = vmatprep.mubr.f32.mxu0 0.0
    %343 = vmatmul.mubr.f32.gmra.mrb[0].mxu0 %v261
    %v344 = vpop.f32.mrb[0].mxu0
    %v345 = vadd.f32 0.0, %v344
    %v346 = vpop.f32.mrb[0].mxu0
    %347 = vmatprep.mubr.f32.mxu0 0.0
    %348 = vmatmul.mubr.f32.gmra.mrb[0].mxu0 %v264
    %v349 = vpop.f32.mrb[0].mxu0
    %v350 = vadd.f32 0.0, %v349
    %v351 = vpop.f32.mrb[0].mxu0
    %352 = vmatprep.mubr.f32.mxu0 0.0
    %353 = vmatmul.mubr.f32.gmra.mrb[0].mxu0 %v267
    %v354 = vpop.f32.mrb[0].mxu0
    %v355 = vadd.f32 0.0, %v354
    %v356 = vpop.f32.mrb[0].mxu0
    %357 = vmatprep.mubr.f32.mxu0 0.0
    %358 = vmatmul.mubr.f32.gmra.mrb[0].mxu0 %v270
    %v359 = vpop.f32.mrb[0].mxu0
    %v360 = vadd.f32 0.0, %v359
    %v361 = vpop.f32.mrb[0].mxu0
    %362 = vmatprep.mubr.f32.mxu0 0.0
    %363 = vmatmul.mubr.f32.gmra.mrb[0].mxu0 %v273
    %v364 = vpop.f32.mrb[0].mxu0
    %v365 = vadd.f32 0.0, %v364
    %v366 = vpop.f32.mrb[0].mxu0
    %367 = vmatprep.mubr.f32.mxu0 0.0
    %368 = vmatmul.mubr.f32.gmra.mrb[0].mxu0 %v276
    %v369 = vpop.f32.mrb[0].mxu0
    %v370 = vadd.f32 0.0, %v369
    %v371 = vpop.f32.mrb[0].mxu0
    %372 = vdwg.mxu0
    %v373 = vld [vmem:[%s2 + $0x38] sm:$0xff]
    %v374 = vld [vmem:[%s2 + $0x40] sm:$0xff]
    %v375 = vld [vmem:[%s2 + $0x48] sm:$0xff]
    %v376 = vld [vmem:[%s2 + $0x50] sm:$0xff]
    %v377 = vld [vmem:[%s2 + $0x58] sm:$0x1]
    %v378 = vlaneseq
    %v379 = vshrl.u32 %v378, 7
    %v380 = vsub.s32 0, %v379
    %v381 = vrot.slane %v377, %v380
    %vm382 = vcmask 261120
    %v384 = vsel %vm382, %v251, 0
    %v387 = vsel %vm382, %v256, 0
    %389 = vmatprep.subr.mxu0 0.0
    %390 = vmatpush1.msra.mxu0 %v373
    %391 = vmatprep.subr.mxu0 0.0
    %392 = vmatpush1.msra.mxu0 %v374
    %393 = vmatprep.subr.mxu0 0.0
    %394 = vmatpush1.msra.mxu0 %v375
    %395 = vmatprep.subr.mxu0 0.0
    %396 = vmatpush1.msra.mxu0 %v376
    %397 = vmatprep.subr.mxu0 0.0
    %398 = vmatpush1.msra.mxu0 0.0
    %399 = vmatprep.subr.mxu0 0.0
    %400 = vmatpush1.msra.mxu0 0.0
    %401 = vmatprep.subr.mxu0 0.0
    %402 = vmatpush1.msra.mxu0 0.0
    %403 = vmatprep.subr.mxu0 0.0
    %404 = vmatpush1.msra.mxu0 0.0
    %405 = vmatprep.subr.mxu0 0.0
    %406 = vmatpush1.msra.mxu0 0.0
    %407 = vmatprep.subr.mxu0 0.0
    %408 = vmatpush1.msra.mxu0 0.0
    %409 = vmatprep.subr.mxu0 0.0
    %410 = vmatpush1.msra.mxu0 0.0
    %411 = vmatprep.subr.mxu0 0.0
    %412 = vmatpush1.msra.mxu0 0.0
    %413 = vmatprep.subr.mxu0 0.0
    %414 = vmatpush1.msra.mxu0 0.0
    %415 = vmatprep.subr.mxu0 0.0
    %416 = vmatpush1.msra.mxu0 0.0
    %417 = vmatprep.subr.mxu0 0.0
    %418 = vmatpush1.msra.mxu0 0.0
    %419 = vmatprep.subr.mxu0 0.0
    %420 = vmatpush1.msra.mxu0 0.0
    %421 = vmatprep.subr.mxu0 0.0
    %422 = vmatpush1.msra.mxu0 0.0
    %423 = vmatprep.subr.mxu0 0.0
    %424 = vmatpush1.msra.mxu0 0.0
    %425 = vmatprep.subr.mxu0 0.0
    %426 = vmatpush1.msra.mxu0 0.0
    %427 = vmatprep.subr.mxu0 0.0
    %428 = vmatpush1.msra.mxu0 0.0
    %429 = vmatprep.subr.mxu0 0.0
    %430 = vmatpush1.msra.mxu0 0.0
    %431 = vmatprep.subr.mxu0 0.0
    %432 = vmatpush1.msra.mxu0 0.0
    %433 = vmatprep.subr.mxu0 0.0
    %434 = vmatpush1.msra.mxu0 0.0
    %435 = vmatprep.subr.mxu0 0.0
    %436 = vmatpush1.msra.mxu0 0.0
    %437 = vmatprep.subr.mxu0 0.0
    %438 = vmatpush1.msra.mxu0 0.0
    %439 = vmatprep.subr.mxu0 0.0
    %440 = vmatpush1.msra.mxu0 0.0
    %441 = vmatprep.subr.mxu0 0.0
    %442 = vmatpush1.msra.mxu0 0.0
    %443 = vmatprep.subr.mxu0 0.0
    %444 = vmatpush1.msra.mxu0 0.0
    %445 = vmatprep.subr.mxu0 0.0
    %446 = vmatpush1.msra.mxu0 0.0
    %447 = vmatprep.subr.mxu0 0.0
    %448 = vmatpush1.msra.mxu0 0.0
    %449 = vmatprep.subr.mxu0 0.0
    %450 = vmatpush1.msra.mxu0 0.0
    %451 = vmatprep.subr.mxu0 0.0
    %452 = vmatpush1.msra.mxu0 0.0
    %453 = vmatprep.mubr.f32.mxu0 0.0
    %454 = vmatmul.mubr.f32.gmra.mrb[0].mxu0 %v384
    %v455 = vpop.f32.mrb[0].mxu0
    %v456 = vadd.f32 %v381, %v455
    %v457 = vpop.f32.mrb[0].mxu0
    %458 = vmatprep.mubr.f32.mxu0 0.0
    %459 = vmatmul.mubr.f32.gmra.mrb[0].mxu0 %v387
    %v460 = vpop.f32.mrb[0].mxu0
    %v461 = vadd.f32 %v381, %v460
    %v462 = vpop.f32.mrb[0].mxu0
    %463 = vdwg.mxu0
    %v464 = vxor.u32 %v456, 2147483648
    %v465 = vxor.u32 %v461, 2147483648
    %v466 = vmul.f32 %v464, 1.442695
    %v467 = vpow.pop %v466
    %v468 = vmul.f32 %v465, 1.442695
    %v469 = vpow.pop %v468
    %v470 = vadd.f32 %v467, 1.0
    %v471 = vadd.f32 %v469, 1.0
    %v472 = vrcp.pop %v470
    %v473 = vmul.f32 1.0, %v472
    %v474 = vrcp.pop %v471
    %v475 = vmul.f32 1.0, %v474
    %v476 = vmul.f32 %v345, %v473
    %v477 = vmul.f32 %v350, %v475
    %v478 = vmul.f32 %v355, %v473
    %v479 = vmul.f32 %v360, %v475
    %v480 = vmul.f32 %v365, %v473
    %v481 = vmul.f32 %v370, %v475
    %v482 = vld [vmem:[%s2 + $0x60] sm:$0xff]
    %v484 = vsel %vm24, %v476, 0
    %v487 = vsel %vm24, %v477, 0
    %v490 = vsel %vm24, %v478, 0
    %v493 = vsel %vm24, %v479, 0
    %v496 = vsel %vm24, %v480, 0
    %v499 = vsel %vm24, %v481, 0
    %501 = vmatprep.subr.mxu0 0.0
    %502 = vmatpush1.msra.mxu0 %v482
    %503 = vmatprep.subr.mxu0 0.0
    %504 = vmatpush1.msra.mxu0 0.0
    %505 = vmatprep.subr.mxu0 0.0
    %506 = vmatpush1.msra.mxu0 0.0
    %507 = vmatprep.subr.mxu0 0.0
    %508 = vmatpush1.msra.mxu0 0.0
    %509 = vmatprep.subr.mxu0 0.0
    %510 = vmatpush1.msra.mxu0 0.0
    %511 = vmatprep.subr.mxu0 0.0
    %512 = vmatpush1.msra.mxu0 0.0
    %513 = vmatprep.subr.mxu0 0.0
    %514 = vmatpush1.msra.mxu0 0.0
    %515 = vmatprep.subr.mxu0 0.0
    %516 = vmatpush1.msra.mxu0 0.0
    %517 = vmatprep.subr.mxu0 0.0
    %518 = vmatpush1.msra.mxu0 0.0
    %519 = vmatprep.subr.mxu0 0.0
    %520 = vmatpush1.msra.mxu0 0.0
    %521 = vmatprep.subr.mxu0 0.0
    %522 = vmatpush1.msra.mxu0 0.0
    %523 = vmatprep.subr.mxu0 0.0
    %524 = vmatpush1.msra.mxu0 0.0
    %525 = vmatprep.subr.mxu0 0.0
    %526 = vmatpush1.msra.mxu0 0.0
    %527 = vmatprep.subr.mxu0 0.0
    %528 = vmatpush1.msra.mxu0 0.0
    %529 = vmatprep.subr.mxu0 0.0
    %530 = vmatpush1.msra.mxu0 0.0
    %531 = vmatprep.subr.mxu0 0.0
    %532 = vmatpush1.msra.mxu0 0.0
    %533 = vmatprep.subr.mxu0 0.0
    %534 = vmatpush1.msra.mxu0 0.0
    %535 = vmatprep.subr.mxu0 0.0
    %536 = vmatpush1.msra.mxu0 0.0
    %537 = vmatprep.subr.mxu0 0.0
    %538 = vmatpush1.msra.mxu0 0.0
    %539 = vmatprep.subr.mxu0 0.0
    %540 = vmatpush1.msra.mxu0 0.0
    %541 = vmatprep.subr.mxu0 0.0
    %542 = vmatpush1.msra.mxu0 0.0
    %543 = vmatprep.subr.mxu0 0.0
    %544 = vmatpush1.msra.mxu0 0.0
    %545 = vmatprep.subr.mxu0 0.0
    %546 = vmatpush1.msra.mxu0 0.0
    %547 = vmatprep.subr.mxu0 0.0
    %548 = vmatpush1.msra.mxu0 0.0
    %549 = vmatprep.subr.mxu0 0.0
    %550 = vmatpush1.msra.mxu0 0.0
    %551 = vmatprep.subr.mxu0 0.0
    %552 = vmatpush1.msra.mxu0 0.0
    %553 = vmatprep.subr.mxu0 0.0
    %554 = vmatpush1.msra.mxu0 0.0
    %555 = vmatprep.subr.mxu0 0.0
    %556 = vmatpush1.msra.mxu0 0.0
    %557 = vmatprep.subr.mxu0 0.0
    %558 = vmatpush1.msra.mxu0 0.0
    %559 = vmatprep.subr.mxu0 0.0
    %560 = vmatpush1.msra.mxu0 0.0
    %561 = vmatprep.subr.mxu0 0.0
    %562 = vmatpush1.msra.mxu0 0.0
    %563 = vmatprep.subr.mxu0 0.0
    %564 = vmatpush1.msra.mxu0 0.0
    %565 = vmatprep.mubr.f32.mxu0 0.0
    %566 = vmatmul.mubr.f32.gmra.mrb[0].mxu0 %v484
    %v567 = vpop.f32.mrb[0].mxu0
    %v568 = vadd.f32 0.0, %v567
    %v569 = vpop.f32.mrb[0].mxu0
    %570 = vmatprep.mubr.f32.mxu0 0.0
    %571 = vmatmul.mubr.f32.gmra.mrb[0].mxu0 %v487
    %v572 = vpop.f32.mrb[0].mxu0
    %v573 = vadd.f32 0.0, %v572
    %v574 = vpop.f32.mrb[0].mxu0
    %575 = vmatprep.mubr.f32.mxu0 0.0
    %576 = vmatmul.mubr.f32.gmra.mrb[0].mxu0 %v490
    %v577 = vpop.f32.mrb[0].mxu0
    %v578 = vadd.f32 0.0, %v577
    %v579 = vpop.f32.mrb[0].mxu0
    %580 = vmatprep.mubr.f32.mxu0 0.0
    %581 = vmatmul.mubr.f32.gmra.mrb[0].mxu0 %v493
    %v582 = vpop.f32.mrb[0].mxu0
    %v583 = vadd.f32 0.0, %v582
    %v584 = vpop.f32.mrb[0].mxu0
    %585 = vmatprep.mubr.f32.mxu0 0.0
    %586 = vmatmul.mubr.f32.gmra.mrb[0].mxu0 %v496
    %v587 = vpop.f32.mrb[0].mxu0
    %v588 = vadd.f32 0.0, %v587
    %v589 = vpop.f32.mrb[0].mxu0
    %590 = vmatprep.mubr.f32.mxu0 0.0
    %591 = vmatmul.mubr.f32.gmra.mrb[0].mxu0 %v499
    %v592 = vpop.f32.mrb[0].mxu0
    %v593 = vadd.f32 0.0, %v592
    %v594 = vpop.f32.mrb[0].mxu0
    %595 = vdwg.mxu0
    %v596 = vmul.f32 %v476, %v568
    %v597 = vmul.f32 %v477, %v573
    %v598 = vmul.f32 %v478, %v578
    %v599 = vmul.f32 %v479, %v583
    %v600 = vadd.f32 %v596, %v598
    %v601 = vadd.f32 %v597, %v599
    %v602 = vmul.f32 %v480, %v588
    %v603 = vmul.f32 %v481, %v593
    %v604 = vadd.f32 %v600, %v602
    %v605 = vadd.f32 %v601, %v603
    %v606 = vmul.f32 %v568, %v568
    %v607 = vmul.f32 %v573, %v573
    %v608 = vmul.f32 %v578, %v578
    %v609 = vmul.f32 %v583, %v583
    %v610 = vadd.f32 %v606, %v608
    %v611 = vadd.f32 %v607, %v609
    %v612 = vmul.f32 %v588, %v588
    %v613 = vmul.f32 %v593, %v593
    %v614 = vadd.f32 %v610, %v612
    %v615 = vadd.f32 %v611, %v613
    %vm616 = vcmp.lt.f32.partialorder %v604, 0.0
    %vm617 = vcmp.lt.f32.partialorder %v605, 0.0
    %v618 = vsel %vm616, 1, 0
    %v619 = vsel %vm617, 1, 0
    %v620 = vcvt.s32.f32 %v618
    %v621 = vcvt.s32.f32 %v619
    %v622 = vmul.f32 %v620, 0.8
    %v623 = vmul.f32 %v621, 0.8
    %v624 = vmul.f32 %v622, %v604
    %v625 = vmul.f32 %v623, %v605
    %v626 = vadd.f32 %v614, 1e-06
    %v627 = vadd.f32 %v615, 1e-06
    %v628 = vrcp.pop %v626
    %v629 = vmul.f32 %v624, %v628
    %v630 = vrcp.pop %v627
    %v631 = vmul.f32 %v625, %v630
    %v632 = vmul.f32 %v629, %v568
    %v633 = vmul.f32 %v631, %v573
    %v634 = vmul.f32 %v629, %v578
    %v635 = vmul.f32 %v631, %v583
    %v636 = vmul.f32 %v629, %v588
    %v637 = vmul.f32 %v631, %v593
    %v638 = vsub.f32 %v476, %v632
    %v639 = vsub.f32 %v477, %v633
    %v640 = vsub.f32 %v478, %v634
    %v641 = vsub.f32 %v479, %v635
    %v642 = vsub.f32 %v480, %v636
    %v643 = vsub.f32 %v481, %v637
    %vm644 = vcmp.ge.f32.partialorder %v251, 0.0
    %vm645 = vcmp.ge.f32.partialorder %v256, 0.0
    %v646 = vmul.f32 %v251, 0.01
    %v647 = vmul.f32 %v256, 0.01
    %v648 = vsel %vm644, %v251, %v646
    %v649 = vsel %vm645, %v256, %v647
    %v650 = vld [vmem:[%s2 + $0x68] sm:$0xff]
    %v652 = vsel %vm24, %v638, 0
    %v655 = vsel %vm24, %v639, 0
    %v658 = vsel %vm24, %v640, 0
    %v661 = vsel %vm24, %v641, 0
    %v664 = vsel %vm24, %v642, 0
    %v667 = vsel %vm24, %v643, 0
    %669 = vmatprep.subr.mxu0 0.0
    %670 = vmatpush1.msra.mxu0 %v650
    %671 = vmatprep.subr.mxu0 0.0
    %672 = vmatpush1.msra.mxu0 0.0
    %673 = vmatprep.subr.mxu0 0.0
    %674 = vmatpush1.msra.mxu0 0.0
    %675 = vmatprep.subr.mxu0 0.0
    %676 = vmatpush1.msra.mxu0 0.0
    %677 = vmatprep.subr.mxu0 0.0
    %678 = vmatpush1.msra.mxu0 0.0
    %679 = vmatprep.subr.mxu0 0.0
    %680 = vmatpush1.msra.mxu0 0.0
    %681 = vmatprep.subr.mxu0 0.0
    %682 = vmatpush1.msra.mxu0 0.0
    %683 = vmatprep.subr.mxu0 0.0
    %684 = vmatpush1.msra.mxu0 0.0
    %685 = vmatprep.subr.mxu0 0.0
    %686 = vmatpush1.msra.mxu0 0.0
    %687 = vmatprep.subr.mxu0 0.0
    %688 = vmatpush1.msra.mxu0 0.0
    %689 = vmatprep.subr.mxu0 0.0
    %690 = vmatpush1.msra.mxu0 0.0
    %691 = vmatprep.subr.mxu0 0.0
    %692 = vmatpush1.msra.mxu0 0.0
    %693 = vmatprep.subr.mxu0 0.0
    %694 = vmatpush1.msra.mxu0 0.0
    %695 = vmatprep.subr.mxu0 0.0
    %696 = vmatpush1.msra.mxu0 0.0
    %697 = vmatprep.subr.mxu0 0.0
    %698 = vmatpush1.msra.mxu0 0.0
    %699 = vmatprep.subr.mxu0 0.0
    %700 = vmatpush1.msra.mxu0 0.0
    %701 = vmatprep.subr.mxu0 0.0
    %702 = vmatpush1.msra.mxu0 0.0
    %703 = vmatprep.subr.mxu0 0.0
    %704 = vmatpush1.msra.mxu0 0.0
    %705 = vmatprep.subr.mxu0 0.0
    %706 = vmatpush1.msra.mxu0 0.0
    %707 = vmatprep.subr.mxu0 0.0
    %708 = vmatpush1.msra.mxu0 0.0
    %709 = vmatprep.subr.mxu0 0.0
    %710 = vmatpush1.msra.mxu0 0.0
    %711 = vmatprep.subr.mxu0 0.0
    %712 = vmatpush1.msra.mxu0 0.0
    %713 = vmatprep.subr.mxu0 0.0
    %714 = vmatpush1.msra.mxu0 0.0
    %715 = vmatprep.subr.mxu0 0.0
    %716 = vmatpush1.msra.mxu0 0.0
    %717 = vmatprep.subr.mxu0 0.0
    %718 = vmatpush1.msra.mxu0 0.0
    %719 = vmatprep.subr.mxu0 0.0
    %720 = vmatpush1.msra.mxu0 0.0
    %721 = vmatprep.subr.mxu0 0.0
    %722 = vmatpush1.msra.mxu0 0.0
    %723 = vmatprep.subr.mxu0 0.0
    %724 = vmatpush1.msra.mxu0 0.0
    %725 = vmatprep.subr.mxu0 0.0
    %726 = vmatpush1.msra.mxu0 0.0
    %727 = vmatprep.subr.mxu0 0.0
    %728 = vmatpush1.msra.mxu0 0.0
    %729 = vmatprep.subr.mxu0 0.0
    %730 = vmatpush1.msra.mxu0 0.0
    %731 = vmatprep.subr.mxu0 0.0
    %732 = vmatpush1.msra.mxu0 0.0
    %733 = vmatprep.mubr.f32.mxu0 0.0
    %734 = vmatmul.mubr.f32.gmra.mrb[0].mxu0 %v652
    %v735 = vpop.f32.mrb[0].mxu0
    %v736 = vadd.f32 0.0, %v735
    %v737 = vpop.f32.mrb[0].mxu0
    %738 = vmatprep.mubr.f32.mxu0 0.0
    %739 = vmatmul.mubr.f32.gmra.mrb[0].mxu0 %v655
    %v740 = vpop.f32.mrb[0].mxu0
    %v741 = vadd.f32 0.0, %v740
    %v742 = vpop.f32.mrb[0].mxu0
    %743 = vmatprep.mubr.f32.mxu0 0.0
    %744 = vmatmul.mubr.f32.gmra.mrb[0].mxu0 %v658
    %v745 = vpop.f32.mrb[0].mxu0
    %v746 = vadd.f32 0.0, %v745
    %v747 = vpop.f32.mrb[0].mxu0
    %748 = vmatprep.mubr.f32.mxu0 0.0
    %749 = vmatmul.mubr.f32.gmra.mrb[0].mxu0 %v661
    %v750 = vpop.f32.mrb[0].mxu0
    %v751 = vadd.f32 0.0, %v750
    %v752 = vpop.f32.mrb[0].mxu0
    %753 = vmatprep.mubr.f32.mxu0 0.0
    %754 = vmatmul.mubr.f32.gmra.mrb[0].mxu0 %v664
    %v755 = vpop.f32.mrb[0].mxu0
    %v756 = vadd.f32 0.0, %v755
    %v757 = vpop.f32.mrb[0].mxu0
    %758 = vmatprep.mubr.f32.mxu0 0.0
    %759 = vmatmul.mubr.f32.gmra.mrb[0].mxu0 %v667
    %v760 = vpop.f32.mrb[0].mxu0
    %v761 = vadd.f32 0.0, %v760
    %v762 = vpop.f32.mrb[0].mxu0
    %763 = vdwg.mxu0
    %v764 = vmul.f32 %v736, %v736
    %v765 = vmul.f32 %v741, %v741
    %v766 = vmul.f32 %v746, %v746
    %v767 = vmul.f32 %v751, %v751
    %v768 = vadd.f32 %v764, %v766
    %v769 = vadd.f32 %v765, %v767
    %v770 = vmul.f32 %v756, %v756
    %v771 = vmul.f32 %v761, %v761
    %v772 = vadd.f32 %v768, %v770
    %v773 = vadd.f32 %v769, %v771
    %v774 = vrsqrt.pop %v772
    %v775 = vmul.f32 %v772, %v774
    %vm776 = vcmp.eq.f32.partialorder %v772, inf
    %v777 = vsel %vm776, %v772, %v775
    %vm778 = vcmp.eq.f32.partialorder %v772, 0.0
    %v779 = vand.u32 %v772, 2147483648
    %v780 = vsel %vm778, %v779, %v777
    %v781 = vrsqrt.pop %v773
    %v782 = vmul.f32 %v773, %v781
    %vm783 = vcmp.eq.f32.partialorder %v773, inf
    %v784 = vsel %vm783, %v773, %v782
    %vm785 = vcmp.eq.f32.partialorder %v773, 0.0
    %v786 = vand.u32 %v773, 2147483648
    %v787 = vsel %vm785, %v786, %v784
    %790 = vrot.lane.b32.xlu0 %v648, 8
    %v791 = vpop.permute.xlu0 %790
    %792 = vrot.lane.b32.xlu0 %v649, 8
    %v793 = vpop.permute.xlu0 %792
    %v796 = vsel %vm24, %v780, %v791
    %v797 = vsel %vm24, %v787, %v793
    %v798 = vld [vmem:[%s2 + $0x70] sm:$0xff]
    %v799 = vld [vmem:[%s2 + $0x78] sm:$0xff]
    %v800 = vld [vmem:[%s2 + $0x80] sm:$0xff]
    %v801 = vld [vmem:[%s2 + $0x88] sm:$0xff]
    %v802 = vld [vmem:[%s2 + $0x90] sm:$0xff]
    %v804 = vsel %vm177, %v796, 0
    %v807 = vsel %vm177, %v797, 0
    %809 = vmatprep.subr.mxu0 0.0
    %810 = vmatpush1.msra.mxu0 %v798
    %811 = vmatprep.subr.mxu0 0.0
    %812 = vmatpush1.msra.mxu0 %v799
    %813 = vmatprep.subr.mxu0 0.0
    %814 = vmatpush1.msra.mxu0 %v800
    %815 = vmatprep.subr.mxu0 0.0
    %816 = vmatpush1.msra.mxu0 %v801
    %817 = vmatprep.subr.mxu0 0.0
    %818 = vmatpush1.msra.mxu0 %v802
    %819 = vmatprep.subr.mxu0 0.0
    %820 = vmatpush1.msra.mxu0 0.0
    %821 = vmatprep.subr.mxu0 0.0
    %822 = vmatpush1.msra.mxu0 0.0
    %823 = vmatprep.subr.mxu0 0.0
    %824 = vmatpush1.msra.mxu0 0.0
    %825 = vmatprep.subr.mxu0 0.0
    %826 = vmatpush1.msra.mxu0 0.0
    %827 = vmatprep.subr.mxu0 0.0
    %828 = vmatpush1.msra.mxu0 0.0
    %829 = vmatprep.subr.mxu0 0.0
    %830 = vmatpush1.msra.mxu0 0.0
    %831 = vmatprep.subr.mxu0 0.0
    %832 = vmatpush1.msra.mxu0 0.0
    %833 = vmatprep.subr.mxu0 0.0
    %834 = vmatpush1.msra.mxu0 0.0
    %835 = vmatprep.subr.mxu0 0.0
    %836 = vmatpush1.msra.mxu0 0.0
    %837 = vmatprep.subr.mxu0 0.0
    %838 = vmatpush1.msra.mxu0 0.0
    %839 = vmatprep.subr.mxu0 0.0
    %840 = vmatpush1.msra.mxu0 0.0
    %841 = vmatprep.subr.mxu0 0.0
    %842 = vmatpush1.msra.mxu0 0.0
    %843 = vmatprep.subr.mxu0 0.0
    %844 = vmatpush1.msra.mxu0 0.0
    %845 = vmatprep.subr.mxu0 0.0
    %846 = vmatpush1.msra.mxu0 0.0
    %847 = vmatprep.subr.mxu0 0.0
    %848 = vmatpush1.msra.mxu0 0.0
    %849 = vmatprep.subr.mxu0 0.0
    %850 = vmatpush1.msra.mxu0 0.0
    %851 = vmatprep.subr.mxu0 0.0
    %852 = vmatpush1.msra.mxu0 0.0
    %853 = vmatprep.subr.mxu0 0.0
    %854 = vmatpush1.msra.mxu0 0.0
    %855 = vmatprep.subr.mxu0 0.0
    %856 = vmatpush1.msra.mxu0 0.0
    %857 = vmatprep.subr.mxu0 0.0
    %858 = vmatpush1.msra.mxu0 0.0
    %859 = vmatprep.subr.mxu0 0.0
    %860 = vmatpush1.msra.mxu0 0.0
    %861 = vmatprep.subr.mxu0 0.0
    %862 = vmatpush1.msra.mxu0 0.0
    %863 = vmatprep.subr.mxu0 0.0
    %864 = vmatpush1.msra.mxu0 0.0
    %865 = vmatprep.subr.mxu0 0.0
    %866 = vmatpush1.msra.mxu0 0.0
    %867 = vmatprep.subr.mxu0 0.0
    %868 = vmatpush1.msra.mxu0 0.0
    %869 = vmatprep.subr.mxu0 0.0
    %870 = vmatpush1.msra.mxu0 0.0
    %871 = vmatprep.subr.mxu0 0.0
    %872 = vmatpush1.msra.mxu0 0.0
    %873 = vmatprep.mubr.f32.mxu0 0.0
    %874 = vmatmul.mubr.f32.gmra.mrb[0].mxu0 %v804
    %v875 = vpop.f32.mrb[0].mxu0
    %v876 = vadd.f32 0.0, %v875
    %v877 = vpop.f32.mrb[0].mxu0
    %878 = vmatprep.mubr.f32.mxu0 0.0
    %879 = vmatmul.mubr.f32.gmra.mrb[0].mxu0 %v807
    %v880 = vpop.f32.mrb[0].mxu0
    %v881 = vadd.f32 0.0, %v880
    %v882 = vpop.f32.mrb[0].mxu0
    %883 = vdwg.mxu0
    %v884 = vld [vmem:[%s2 + $0x98] sm:$0xff]
    %v886 = vsel %vm24, %v736, 0
    %v889 = vsel %vm24, %v741, 0
    %v892 = vsel %vm24, %v746, 0
    %v895 = vsel %vm24, %v751, 0
    %v898 = vsel %vm24, %v756, 0
    %v901 = vsel %vm24, %v761, 0
    %903 = vmatprep.subr.mxu0 0.0
    %904 = vmatpush1.msra.mxu0 %v884
    %905 = vmatprep.subr.mxu0 0.0
    %906 = vmatpush1.msra.mxu0 0.0
    %907 = vmatprep.subr.mxu0 0.0
    %908 = vmatpush1.msra.mxu0 0.0
    %909 = vmatprep.subr.mxu0 0.0
    %910 = vmatpush1.msra.mxu0 0.0
    %911 = vmatprep.subr.mxu0 0.0
    %912 = vmatpush1.msra.mxu0 0.0
    %913 = vmatprep.subr.mxu0 0.0
    %914 = vmatpush1.msra.mxu0 0.0
    %915 = vmatprep.subr.mxu0 0.0
    %916 = vmatpush1.msra.mxu0 0.0
    %917 = vmatprep.subr.mxu0 0.0
    %918 = vmatpush1.msra.mxu0 0.0
    %919 = vmatprep.subr.mxu0 0.0
    %920 = vmatpush1.msra.mxu0 0.0
    %921 = vmatprep.subr.mxu0 0.0
    %922 = vmatpush1.msra.mxu0 0.0
    %923 = vmatprep.subr.mxu0 0.0
    %924 = vmatpush1.msra.mxu0 0.0
    %925 = vmatprep.subr.mxu0 0.0
    %926 = vmatpush1.msra.mxu0 0.0
    %927 = vmatprep.subr.mxu0 0.0
    %928 = vmatpush1.msra.mxu0 0.0
    %929 = vmatprep.subr.mxu0 0.0
    %930 = vmatpush1.msra.mxu0 0.0
    %931 = vmatprep.subr.mxu0 0.0
    %932 = vmatpush1.msra.mxu0 0.0
    %933 = vmatprep.subr.mxu0 0.0
    %934 = vmatpush1.msra.mxu0 0.0
    %935 = vmatprep.subr.mxu0 0.0
    %936 = vmatpush1.msra.mxu0 0.0
    %937 = vmatprep.subr.mxu0 0.0
    %938 = vmatpush1.msra.mxu0 0.0
    %939 = vmatprep.subr.mxu0 0.0
    %940 = vmatpush1.msra.mxu0 0.0
    %941 = vmatprep.subr.mxu0 0.0
    %942 = vmatpush1.msra.mxu0 0.0
    %943 = vmatprep.subr.mxu0 0.0
    %944 = vmatpush1.msra.mxu0 0.0
    %945 = vmatprep.subr.mxu0 0.0
    %946 = vmatpush1.msra.mxu0 0.0
    %947 = vmatprep.subr.mxu0 0.0
    %948 = vmatpush1.msra.mxu0 0.0
    %949 = vmatprep.subr.mxu0 0.0
    %950 = vmatpush1.msra.mxu0 0.0
    %951 = vmatprep.subr.mxu0 0.0
    %952 = vmatpush1.msra.mxu0 0.0
    %953 = vmatprep.subr.mxu0 0.0
    %954 = vmatpush1.msra.mxu0 0.0
    %955 = vmatprep.subr.mxu0 0.0
    %956 = vmatpush1.msra.mxu0 0.0
    %957 = vmatprep.subr.mxu0 0.0
    %958 = vmatpush1.msra.mxu0 0.0
    %959 = vmatprep.subr.mxu0 0.0
    %960 = vmatpush1.msra.mxu0 0.0
    %961 = vmatprep.subr.mxu0 0.0
    %962 = vmatpush1.msra.mxu0 0.0
    %963 = vmatprep.subr.mxu0 0.0
    %964 = vmatpush1.msra.mxu0 0.0
    %965 = vmatprep.subr.mxu0 0.0
    %966 = vmatpush1.msra.mxu0 0.0
    %967 = vmatprep.mubr.f32.mxu0 0.0
    %968 = vmatmul.mubr.f32.gmra.mrb[0].mxu0 %v886
    %v969 = vpop.f32.mrb[0].mxu0
    %v970 = vadd.f32 0.0, %v969
    %v971 = vpop.f32.mrb[0].mxu0
    %972 = vmatprep.mubr.f32.mxu0 0.0
    %973 = vmatmul.mubr.f32.gmra.mrb[0].mxu0 %v889
    %v974 = vpop.f32.mrb[0].mxu0
    %v975 = vadd.f32 0.0, %v974
    %v976 = vpop.f32.mrb[0].mxu0
    %977 = vmatprep.mubr.f32.mxu0 0.0
    %978 = vmatmul.mubr.f32.gmra.mrb[0].mxu0 %v892
    %v979 = vpop.f32.mrb[0].mxu0
    %v980 = vadd.f32 0.0, %v979
    %v981 = vpop.f32.mrb[0].mxu0
    %982 = vmatprep.mubr.f32.mxu0 0.0
    %983 = vmatmul.mubr.f32.gmra.mrb[0].mxu0 %v895
    %v984 = vpop.f32.mrb[0].mxu0
    %v985 = vadd.f32 0.0, %v984
    %v986 = vpop.f32.mrb[0].mxu0
    %987 = vmatprep.mubr.f32.mxu0 0.0
    %988 = vmatmul.mubr.f32.gmra.mrb[0].mxu0 %v898
    %v989 = vpop.f32.mrb[0].mxu0
    %v990 = vadd.f32 0.0, %v989
    %v991 = vpop.f32.mrb[0].mxu0
    %992 = vmatprep.mubr.f32.mxu0 0.0
    %993 = vmatmul.mubr.f32.gmra.mrb[0].mxu0 %v901
    %v994 = vpop.f32.mrb[0].mxu0
    %v995 = vadd.f32 0.0, %v994
    %v996 = vpop.f32.mrb[0].mxu0
    %997 = vdwg.mxu0
    %v998 = vld [vmem:[%s2 + $0xa0] sm:$0xff]
    %v999 = vld [vmem:[%s2 + $0xa8] sm:$0xff]
    %v1000 = vld [vmem:[%s2 + $0xb0] sm:$0xff]
    %v1001 = vld [vmem:[%s2 + $0xb8] sm:$0xff]
    %v1002 = vld [vmem:[%s2 + $0xc0] sm:$0x1]
    %v1003 = vlaneseq
    %v1004 = vshrl.u32 %v1003, 7
    %v1005 = vsub.s32 0, %v1004
    %v1006 = vrot.slane %v1002, %v1005
    %v1008 = vsel %vm382, %v876, 0
    %v1011 = vsel %vm382, %v881, 0
    %1013 = vmatprep.subr.mxu0 0.0
    %1014 = vmatpush1.msra.mxu0 %v998
    %1015 = vmatprep.subr.mxu0 0.0
    %1016 = vmatpush1.msra.mxu0 %v999
    %1017 = vmatprep.subr.mxu0 0.0
    %1018 = vmatpush1.msra.mxu0 %v1000
    %1019 = vmatprep.subr.mxu0 0.0
    %1020 = vmatpush1.msra.mxu0 %v1001
    %1021 = vmatprep.subr.mxu0 0.0
    %1022 = vmatpush1.msra.mxu0 0.0
    %1023 = vmatprep.subr.mxu0 0.0
    %1024 = vmatpush1.msra.mxu0 0.0
    %1025 = vmatprep.subr.mxu0 0.0
    %1026 = vmatpush1.msra.mxu0 0.0
    %1027 = vmatprep.subr.mxu0 0.0
    %1028 = vmatpush1.msra.mxu0 0.0
    %1029 = vmatprep.subr.mxu0 0.0
    %1030 = vmatpush1.msra.mxu0 0.0
    %1031 = vmatprep.subr.mxu0 0.0
    %1032 = vmatpush1.msra.mxu0 0.0
    %1033 = vmatprep.subr.mxu0 0.0
    %1034 = vmatpush1.msra.mxu0 0.0
    %1035 = vmatprep.subr.mxu0 0.0
    %1036 = vmatpush1.msra.mxu0 0.0
    %1037 = vmatprep.subr.mxu0 0.0
    %1038 = vmatpush1.msra.mxu0 0.0
    %1039 = vmatprep.subr.mxu0 0.0
    %1040 = vmatpush1.msra.mxu0 0.0
    %1041 = vmatprep.subr.mxu0 0.0
    %1042 = vmatpush1.msra.mxu0 0.0
    %1043 = vmatprep.subr.mxu0 0.0
    %1044 = vmatpush1.msra.mxu0 0.0
    %1045 = vmatprep.subr.mxu0 0.0
    %1046 = vmatpush1.msra.mxu0 0.0
    %1047 = vmatprep.subr.mxu0 0.0
    %1048 = vmatpush1.msra.mxu0 0.0
    %1049 = vmatprep.subr.mxu0 0.0
    %1050 = vmatpush1.msra.mxu0 0.0
    %1051 = vmatprep.subr.mxu0 0.0
    %1052 = vmatpush1.msra.mxu0 0.0
    %1053 = vmatprep.subr.mxu0 0.0
    %1054 = vmatpush1.msra.mxu0 0.0
    %1055 = vmatprep.subr.mxu0 0.0
    %1056 = vmatpush1.msra.mxu0 0.0
    %1057 = vmatprep.subr.mxu0 0.0
    %1058 = vmatpush1.msra.mxu0 0.0
    %1059 = vmatprep.subr.mxu0 0.0
    %1060 = vmatpush1.msra.mxu0 0.0
    %1061 = vmatprep.subr.mxu0 0.0
    %1062 = vmatpush1.msra.mxu0 0.0
    %1063 = vmatprep.subr.mxu0 0.0
    %1064 = vmatpush1.msra.mxu0 0.0
    %1065 = vmatprep.subr.mxu0 0.0
    %1066 = vmatpush1.msra.mxu0 0.0
    %1067 = vmatprep.subr.mxu0 0.0
    %1068 = vmatpush1.msra.mxu0 0.0
    %1069 = vmatprep.subr.mxu0 0.0
    %1070 = vmatpush1.msra.mxu0 0.0
    %1071 = vmatprep.subr.mxu0 0.0
    %1072 = vmatpush1.msra.mxu0 0.0
    %1073 = vmatprep.subr.mxu0 0.0
    %1074 = vmatpush1.msra.mxu0 0.0
    %1075 = vmatprep.subr.mxu0 0.0
    %1076 = vmatpush1.msra.mxu0 0.0
    %1077 = vmatprep.mubr.f32.mxu0 0.0
    %1078 = vmatmul.mubr.f32.gmra.mrb[0].mxu0 %v1008
    %v1079 = vpop.f32.mrb[0].mxu0
    %v1080 = vadd.f32 %v1006, %v1079
    %v1081 = vpop.f32.mrb[0].mxu0
    %1082 = vmatprep.mubr.f32.mxu0 0.0
    %1083 = vmatmul.mubr.f32.gmra.mrb[0].mxu0 %v1011
    %v1084 = vpop.f32.mrb[0].mxu0
    %v1085 = vadd.f32 %v1006, %v1084
    %v1086 = vpop.f32.mrb[0].mxu0
    %1087 = vdwg.mxu0
    %v1088 = vxor.u32 %v1080, 2147483648
    %v1089 = vxor.u32 %v1085, 2147483648
    %v1090 = vmul.f32 %v1088, 1.442695
    %v1091 = vpow.pop %v1090
    %v1092 = vmul.f32 %v1089, 1.442695
    %v1093 = vpow.pop %v1092
    %v1094 = vadd.f32 %v1091, 1.0
    %v1095 = vadd.f32 %v1093, 1.0
    %v1096 = vrcp.pop %v1094
    %v1097 = vmul.f32 1.0, %v1096
    %v1098 = vrcp.pop %v1095
    %v1099 = vmul.f32 1.0, %v1098
    %v1100 = vmul.f32 %v970, %v1097
    %v1101 = vmul.f32 %v975, %v1099
    %v1102 = vmul.f32 %v980, %v1097
    %v1103 = vmul.f32 %v985, %v1099
    %v1104 = vmul.f32 %v990, %v1097
    %v1105 = vmul.f32 %v995, %v1099
    %v1106 = vld [vmem:[%s2 + $0xc8] sm:$0xff]
    %v1108 = vsel %vm24, %v1100, 0
    %v1111 = vsel %vm24, %v1101, 0
    %v1114 = vsel %vm24, %v1102, 0
    %v1117 = vsel %vm24, %v1103, 0
    %v1120 = vsel %vm24, %v1104, 0
    %v1123 = vsel %vm24, %v1105, 0
    %1125 = vmatprep.subr.mxu0 0.0
    %1126 = vmatpush1.msra.mxu0 %v1106
    %1127 = vmatprep.subr.mxu0 0.0
    %1128 = vmatpush1.msra.mxu0 0.0
    %1129 = vmatprep.subr.mxu0 0.0
    %1130 = vmatpush1.msra.mxu0 0.0
    %1131 = vmatprep.subr.mxu0 0.0
    %1132 = vmatpush1.msra.mxu0 0.0
    %1133 = vmatprep.subr.mxu0 0.0
    %1134 = vmatpush1.msra.mxu0 0.0
    %1135 = vmatprep.subr.mxu0 0.0
    %1136 = vmatpush1.msra.mxu0 0.0
    %1137 = vmatprep.subr.mxu0 0.0
    %1138 = vmatpush1.msra.mxu0 0.0
    %1139 = vmatprep.subr.mxu0 0.0
    %1140 = vmatpush1.msra.mxu0 0.0
    %1141 = vmatprep.subr.mxu0 0.0
    %1142 = vmatpush1.msra.mxu0 0.0
    %1143 = vmatprep.subr.mxu0 0.0
    %1144 = vmatpush1.msra.mxu0 0.0
    %1145 = vmatprep.subr.mxu0 0.0
    %1146 = vmatpush1.msra.mxu0 0.0
    %1147 = vmatprep.subr.mxu0 0.0
    %1148 = vmatpush1.msra.mxu0 0.0
    %1149 = vmatprep.subr.mxu0 0.0
    %1150 = vmatpush1.msra.mxu0 0.0
    %1151 = vmatprep.subr.mxu0 0.0
    %1152 = vmatpush1.msra.mxu0 0.0
    %1153 = vmatprep.subr.mxu0 0.0
    %1154 = vmatpush1.msra.mxu0 0.0
    %1155 = vmatprep.subr.mxu0 0.0
    %1156 = vmatpush1.msra.mxu0 0.0
    %1157 = vmatprep.subr.mxu0 0.0
    %1158 = vmatpush1.msra.mxu0 0.0
    %1159 = vmatprep.subr.mxu0 0.0
    %1160 = vmatpush1.msra.mxu0 0.0
    %1161 = vmatprep.subr.mxu0 0.0
    %1162 = vmatpush1.msra.mxu0 0.0
    %1163 = vmatprep.subr.mxu0 0.0
    %1164 = vmatpush1.msra.mxu0 0.0
    %1165 = vmatprep.subr.mxu0 0.0
    %1166 = vmatpush1.msra.mxu0 0.0
    %1167 = vmatprep.subr.mxu0 0.0
    %1168 = vmatpush1.msra.mxu0 0.0
    %1169 = vmatprep.subr.mxu0 0.0
    %1170 = vmatpush1.msra.mxu0 0.0
    %1171 = vmatprep.subr.mxu0 0.0
    %1172 = vmatpush1.msra.mxu0 0.0
    %1173 = vmatprep.subr.mxu0 0.0
    %1174 = vmatpush1.msra.mxu0 0.0
    %1175 = vmatprep.subr.mxu0 0.0
    %1176 = vmatpush1.msra.mxu0 0.0
    %1177 = vmatprep.subr.mxu0 0.0
    %1178 = vmatpush1.msra.mxu0 0.0
    %1179 = vmatprep.subr.mxu0 0.0
    %1180 = vmatpush1.msra.mxu0 0.0
    %1181 = vmatprep.subr.mxu0 0.0
    %1182 = vmatpush1.msra.mxu0 0.0
    %1183 = vmatprep.subr.mxu0 0.0
    %1184 = vmatpush1.msra.mxu0 0.0
    %1185 = vmatprep.subr.mxu0 0.0
    %1186 = vmatpush1.msra.mxu0 0.0
    %1187 = vmatprep.subr.mxu0 0.0
    %1188 = vmatpush1.msra.mxu0 0.0
    %1189 = vmatprep.mubr.f32.mxu0 0.0
    %1190 = vmatmul.mubr.f32.gmra.mrb[0].mxu0 %v1108
    %v1191 = vpop.f32.mrb[0].mxu0
    %v1192 = vadd.f32 0.0, %v1191
    %v1193 = vpop.f32.mrb[0].mxu0
    %1194 = vmatprep.mubr.f32.mxu0 0.0
    %1195 = vmatmul.mubr.f32.gmra.mrb[0].mxu0 %v1111
    %v1196 = vpop.f32.mrb[0].mxu0
    %v1197 = vadd.f32 0.0, %v1196
    %v1198 = vpop.f32.mrb[0].mxu0
    %1199 = vmatprep.mubr.f32.mxu0 0.0
    %1200 = vmatmul.mubr.f32.gmra.mrb[0].mxu0 %v1114
    %v1201 = vpop.f32.mrb[0].mxu0
    %v1202 = vadd.f32 0.0, %v1201
    %v1203 = vpop.f32.mrb[0].mxu0
    %1204 = vmatprep.mubr.f32.mxu0 0.0
    %1205 = vmatmul.mubr.f32.gmra.mrb[0].mxu0 %v1117
    %v1206 = vpop.f32.mrb[0].mxu0
    %v1207 = vadd.f32 0.0, %v1206
    %v1208 = vpop.f32.mrb[0].mxu0
    %1209 = vmatprep.mubr.f32.mxu0 0.0
    %1210 = vmatmul.mubr.f32.gmra.mrb[0].mxu0 %v1120
    %v1211 = vpop.f32.mrb[0].mxu0
    %v1212 = vadd.f32 0.0, %v1211
    %v1213 = vpop.f32.mrb[0].mxu0
    %1214 = vmatprep.mubr.f32.mxu0 0.0
    %1215 = vmatmul.mubr.f32.gmra.mrb[0].mxu0 %v1123
    %v1216 = vpop.f32.mrb[0].mxu0
    %v1217 = vadd.f32 0.0, %v1216
    %v1218 = vpop.f32.mrb[0].mxu0
    %1219 = vdwg.mxu0
    %v1220 = vmul.f32 %v1192, %v1192
    %v1221 = vmul.f32 %v1197, %v1197
    %v1222 = vmul.f32 %v1202, %v1202
    %v1223 = vmul.f32 %v1207, %v1207
    %v1224 = vadd.f32 %v1220, %v1222
    %v1225 = vadd.f32 %v1221, %v1223
    %v1226 = vmul.f32 %v1212, %v1212
    %v1227 = vmul.f32 %v1217, %v1217
    %v1228 = vadd.f32 %v1224, %v1226
    %v1229 = vadd.f32 %v1225, %v1227
    %v1230 = vrsqrt.pop %v1228
    %v1231 = vmul.f32 %v1228, %v1230
    %vm1232 = vcmp.eq.f32.partialorder %v1228, inf
    %v1233 = vsel %vm1232, %v1228, %v1231
    %vm1234 = vcmp.eq.f32.partialorder %v1228, 0.0
    %v1235 = vand.u32 %v1228, 2147483648
    %v1236 = vsel %vm1234, %v1235, %v1233
    %v1237 = vrsqrt.pop %v1229
    %v1238 = vmul.f32 %v1229, %v1237
    %vm1239 = vcmp.eq.f32.partialorder %v1229, inf
    %v1240 = vsel %vm1239, %v1229, %v1238
    %vm1241 = vcmp.eq.f32.partialorder %v1229, 0.0
    %v1242 = vand.u32 %v1229, 2147483648
    %v1243 = vsel %vm1241, %v1242, %v1240
    %1244 = vrot.lane.b32.xlu0 %v876, 24
    %v1245 = vpop.permute.xlu0 %1244
    %1246 = vrot.lane.b32.xlu0 %v881, 24
    %v1247 = vpop.permute.xlu0 %1246
    %vm1250 = vcmask 195584
    %v1251 = vsel %vm1250, %v1236, %v1245
    %v1252 = vsel %vm1250, %v1243, %v1247
    %v1253 = vld [vmem:[%s2 + $0xd0] sm:$0xff]
    %v1254 = vld [vmem:[%s2 + $0xd8] sm:$0xff]
    %v1255 = vld [vmem:[%s2 + $0xe0] sm:$0xff]
    %v1256 = vld [vmem:[%s2 + $0xe8] sm:$0xff]
    %v1257 = vld [vmem:[%s2 + $0xf0] sm:$0xff]
    %v1258 = vld [vmem:[%s2 + $0xf8] sm:$0xff]
    %v1259 = vld [vmem:[%s2 + $0x100] sm:$0xff]
    %vm1260 = vcmask 457728
    %v1262 = vsel %vm1260, %v1251, 0
    %v1265 = vsel %vm1260, %v1252, 0
    %1267 = vmatprep.subr.mxu0 0.0
    %1268 = vmatpush1.msra.mxu0 %v1253
    %1269 = vmatprep.subr.mxu0 0.0
    %1270 = vmatpush1.msra.mxu0 %v1254
    %1271 = vmatprep.subr.mxu0 0.0
    %1272 = vmatpush1.msra.mxu0 %v1255
    %1273 = vmatprep.subr.mxu0 0.0
    %1274 = vmatpush1.msra.mxu0 %v1256
    %1275 = vmatprep.subr.mxu0 0.0
    %1276 = vmatpush1.msra.mxu0 %v1257
    %1277 = vmatprep.subr.mxu0 0.0
    %1278 = vmatpush1.msra.mxu0 %v1258
    %1279 = vmatprep.subr.mxu0 0.0
    %1280 = vmatpush1.msra.mxu0 %v1259
    %1281 = vmatprep.subr.mxu0 0.0
    %1282 = vmatpush1.msra.mxu0 0.0
    %1283 = vmatprep.subr.mxu0 0.0
    %1284 = vmatpush1.msra.mxu0 0.0
    %1285 = vmatprep.subr.mxu0 0.0
    %1286 = vmatpush1.msra.mxu0 0.0
    %1287 = vmatprep.subr.mxu0 0.0
    %1288 = vmatpush1.msra.mxu0 0.0
    %1289 = vmatprep.subr.mxu0 0.0
    %1290 = vmatpush1.msra.mxu0 0.0
    %1291 = vmatprep.subr.mxu0 0.0
    %1292 = vmatpush1.msra.mxu0 0.0
    %1293 = vmatprep.subr.mxu0 0.0
    %1294 = vmatpush1.msra.mxu0 0.0
    %1295 = vmatprep.subr.mxu0 0.0
    %1296 = vmatpush1.msra.mxu0 0.0
    %1297 = vmatprep.subr.mxu0 0.0
    %1298 = vmatpush1.msra.mxu0 0.0
    %1299 = vmatprep.subr.mxu0 0.0
    %1300 = vmatpush1.msra.mxu0 0.0
    %1301 = vmatprep.subr.mxu0 0.0
    %1302 = vmatpush1.msra.mxu0 0.0
    %1303 = vmatprep.subr.mxu0 0.0
    %1304 = vmatpush1.msra.mxu0 0.0
    %1305 = vmatprep.subr.mxu0 0.0
    %1306 = vmatpush1.msra.mxu0 0.0
    %1307 = vmatprep.subr.mxu0 0.0
    %1308 = vmatpush1.msra.mxu0 0.0
    %1309 = vmatprep.subr.mxu0 0.0
    %1310 = vmatpush1.msra.mxu0 0.0
    %1311 = vmatprep.subr.mxu0 0.0
    %1312 = vmatpush1.msra.mxu0 0.0
    %1313 = vmatprep.subr.mxu0 0.0
    %1314 = vmatpush1.msra.mxu0 0.0
    %1315 = vmatprep.subr.mxu0 0.0
    %1316 = vmatpush1.msra.mxu0 0.0
    %1317 = vmatprep.subr.mxu0 0.0
    %1318 = vmatpush1.msra.mxu0 0.0
    %1319 = vmatprep.subr.mxu0 0.0
    %1320 = vmatpush1.msra.mxu0 0.0
    %1321 = vmatprep.subr.mxu0 0.0
    %1322 = vmatpush1.msra.mxu0 0.0
    %1323 = vmatprep.subr.mxu0 0.0
    %1324 = vmatpush1.msra.mxu0 0.0
    %1325 = vmatprep.subr.mxu0 0.0
    %1326 = vmatpush1.msra.mxu0 0.0
    %1327 = vmatprep.subr.mxu0 0.0
    %1328 = vmatpush1.msra.mxu0 0.0
    %1329 = vmatprep.subr.mxu0 0.0
    %1330 = vmatpush1.msra.mxu0 0.0
    %1331 = vmatprep.mubr.f32.mxu0 0.0
    %1332 = vmatmul.mubr.f32.gmra.mrb[0].mxu0 %v1262
    %v1333 = vpop.f32.mrb[0].mxu0
    %v1334 = vadd.f32 0.0, %v1333
    %v1335 = vpop.f32.mrb[0].mxu0
    %1336 = vmatprep.mubr.f32.mxu0 0.0
    %1337 = vmatmul.mubr.f32.gmra.mrb[0].mxu0 %v1265
    %v1338 = vpop.f32.mrb[0].mxu0
    %v1339 = vadd.f32 0.0, %v1338
    %v1340 = vpop.f32.mrb[0].mxu0
    %1341 = vdwg.mxu0
    %v1342 = vld [vmem:[%s2 + $0x108] sm:$0xff]
    %v1343 = vld [vmem:[%s2 + $0x110] sm:$0xff]
    %v1344 = vld [vmem:[%s2 + $0x118] sm:$0xff]
    %v1346 = vsel %vm1250, %v1192, 0
    %v1349 = vsel %vm1250, %v1197, 0
    %v1352 = vsel %vm1250, %v1202, 0
    %v1355 = vsel %vm1250, %v1207, 0
    %v1358 = vsel %vm1250, %v1212, 0
    %v1361 = vsel %vm1250, %v1217, 0
    %1363 = vmatprep.subr.mxu0 0.0
    %1364 = vmatpush1.msra.mxu0 %v1342
    %1365 = vmatprep.subr.mxu0 0.0
    %1366 = vmatpush1.msra.mxu0 %v1343
    %1367 = vmatprep.subr.mxu0 0.0
    %1368 = vmatpush1.msra.mxu0 %v1344
    %1369 = vmatprep.subr.mxu0 0.0
    %1370 = vmatpush1.msra.mxu0 0.0
    %1371 = vmatprep.subr.mxu0 0.0
    %1372 = vmatpush1.msra.mxu0 0.0
    %1373 = vmatprep.subr.mxu0 0.0
    %1374 = vmatpush1.msra.mxu0 0.0
    %1375 = vmatprep.subr.mxu0 0.0
    %1376 = vmatpush1.msra.mxu0 0.0
    %1377 = vmatprep.subr.mxu0 0.0
    %1378 = vmatpush1.msra.mxu0 0.0
    %1379 = vmatprep.subr.mxu0 0.0
    %1380 = vmatpush1.msra.mxu0 0.0
    %1381 = vmatprep.subr.mxu0 0.0
    %1382 = vmatpush1.msra.mxu0 0.0
    %1383 = vmatprep.subr.mxu0 0.0
    %1384 = vmatpush1.msra.mxu0 0.0
    %1385 = vmatprep.subr.mxu0 0.0
    %1386 = vmatpush1.msra.mxu0 0.0
    %1387 = vmatprep.subr.mxu0 0.0
    %1388 = vmatpush1.msra.mxu0 0.0
    %1389 = vmatprep.subr.mxu0 0.0
    %1390 = vmatpush1.msra.mxu0 0.0
    %1391 = vmatprep.subr.mxu0 0.0
    %1392 = vmatpush1.msra.mxu0 0.0
    %1393 = vmatprep.subr.mxu0 0.0
    %1394 = vmatpush1.msra.mxu0 0.0
    %1395 = vmatprep.subr.mxu0 0.0
    %1396 = vmatpush1.msra.mxu0 0.0
    %1397 = vmatprep.subr.mxu0 0.0
    %1398 = vmatpush1.msra.mxu0 0.0
    %1399 = vmatprep.subr.mxu0 0.0
    %1400 = vmatpush1.msra.mxu0 0.0
    %1401 = vmatprep.subr.mxu0 0.0
    %1402 = vmatpush1.msra.mxu0 0.0
    %1403 = vmatprep.subr.mxu0 0.0
    %1404 = vmatpush1.msra.mxu0 0.0
    %1405 = vmatprep.subr.mxu0 0.0
    %1406 = vmatpush1.msra.mxu0 0.0
    %1407 = vmatprep.subr.mxu0 0.0
    %1408 = vmatpush1.msra.mxu0 0.0
    %1409 = vmatprep.subr.mxu0 0.0
    %1410 = vmatpush1.msra.mxu0 0.0
    %1411 = vmatprep.subr.mxu0 0.0
    %1412 = vmatpush1.msra.mxu0 0.0
    %1413 = vmatprep.subr.mxu0 0.0
    %1414 = vmatpush1.msra.mxu0 0.0
    %1415 = vmatprep.subr.mxu0 0.0
    %1416 = vmatpush1.msra.mxu0 0.0
    %1417 = vmatprep.subr.mxu0 0.0
    %1418 = vmatpush1.msra.mxu0 0.0
    %1419 = vmatprep.subr.mxu0 0.0
    %1420 = vmatpush1.msra.mxu0 0.0
    %1421 = vmatprep.subr.mxu0 0.0
    %1422 = vmatpush1.msra.mxu0 0.0
    %1423 = vmatprep.subr.mxu0 0.0
    %1424 = vmatpush1.msra.mxu0 0.0
    %1425 = vmatprep.subr.mxu0 0.0
    %1426 = vmatpush1.msra.mxu0 0.0
    %1427 = vmatprep.mubr.f32.mxu0 0.0
    %1428 = vmatmul.mubr.f32.gmra.mrb[0].mxu0 %v1346
    %v1429 = vpop.f32.mrb[0].mxu0
    %v1430 = vadd.f32 0.0, %v1429
    %v1431 = vpop.f32.mrb[0].mxu0
    %1432 = vmatprep.mubr.f32.mxu0 0.0
    %1433 = vmatmul.mubr.f32.gmra.mrb[0].mxu0 %v1349
    %v1434 = vpop.f32.mrb[0].mxu0
    %v1435 = vadd.f32 0.0, %v1434
    %v1436 = vpop.f32.mrb[0].mxu0
    %1437 = vmatprep.mubr.f32.mxu0 0.0
    %1438 = vmatmul.mubr.f32.gmra.mrb[0].mxu0 %v1352
    %v1439 = vpop.f32.mrb[0].mxu0
    %v1440 = vadd.f32 0.0, %v1439
    %v1441 = vpop.f32.mrb[0].mxu0
    %1442 = vmatprep.mubr.f32.mxu0 0.0
    %1443 = vmatmul.mubr.f32.gmra.mrb[0].mxu0 %v1355
    %v1444 = vpop.f32.mrb[0].mxu0
    %v1445 = vadd.f32 0.0, %v1444
    %v1446 = vpop.f32.mrb[0].mxu0
    %1447 = vmatprep.mubr.f32.mxu0 0.0
    %1448 = vmatmul.mubr.f32.gmra.mrb[0].mxu0 %v1358
    %v1449 = vpop.f32.mrb[0].mxu0
    %v1450 = vadd.f32 0.0, %v1449
    %v1451 = vpop.f32.mrb[0].mxu0
    %1452 = vmatprep.mubr.f32.mxu0 0.0
    %1453 = vmatmul.mubr.f32.gmra.mrb[0].mxu0 %v1361
    %v1454 = vpop.f32.mrb[0].mxu0
    %v1455 = vadd.f32 0.0, %v1454
    %v1456 = vpop.f32.mrb[0].mxu0
    %1457 = vdwg.mxu0
    %v1458 = vld [vmem:[%s2 + $0x120] sm:$0xff]
    %v1459 = vld [vmem:[%s2 + $0x128] sm:$0x1]
    %v1460 = vlaneseq
    %v1461 = vshrl.u32 %v1460, 7
    %v1462 = vsub.s32 0, %v1461
    %v1463 = vrot.slane %v1459, %v1462
    %v1465 = vsel %vm24, %v1334, 0
    %v1468 = vsel %vm24, %v1339, 0
    %1470 = vmatprep.subr.mxu0 0.0
    %1471 = vmatpush1.msra.mxu0 %v1458
    %1472 = vmatprep.subr.mxu0 0.0
    %1473 = vmatpush1.msra.mxu0 0.0
    %1474 = vmatprep.subr.mxu0 0.0
    %1475 = vmatpush1.msra.mxu0 0.0
    %1476 = vmatprep.subr.mxu0 0.0
    %1477 = vmatpush1.msra.mxu0 0.0
    %1478 = vmatprep.subr.mxu0 0.0
    %1479 = vmatpush1.msra.mxu0 0.0
    %1480 = vmatprep.subr.mxu0 0.0
    %1481 = vmatpush1.msra.mxu0 0.0
    %1482 = vmatprep.subr.mxu0 0.0
    %1483 = vmatpush1.msra.mxu0 0.0
    %1484 = vmatprep.subr.mxu0 0.0
    %1485 = vmatpush1.msra.mxu0 0.0
    %1486 = vmatprep.subr.mxu0 0.0
    %1487 = vmatpush1.msra.mxu0 0.0
    %1488 = vmatprep.subr.mxu0 0.0
    %1489 = vmatpush1.msra.mxu0 0.0
    %1490 = vmatprep.subr.mxu0 0.0
    %1491 = vmatpush1.msra.mxu0 0.0
    %1492 = vmatprep.subr.mxu0 0.0
    %1493 = vmatpush1.msra.mxu0 0.0
    %1494 = vmatprep.subr.mxu0 0.0
    %1495 = vmatpush1.msra.mxu0 0.0
    %1496 = vmatprep.subr.mxu0 0.0
    %1497 = vmatpush1.msra.mxu0 0.0
    %1498 = vmatprep.subr.mxu0 0.0
    %1499 = vmatpush1.msra.mxu0 0.0
    %1500 = vmatprep.subr.mxu0 0.0
    %1501 = vmatpush1.msra.mxu0 0.0
    %1502 = vmatprep.subr.mxu0 0.0
    %1503 = vmatpush1.msra.mxu0 0.0
    %1504 = vmatprep.subr.mxu0 0.0
    %1505 = vmatpush1.msra.mxu0 0.0
    %1506 = vmatprep.subr.mxu0 0.0
    %1507 = vmatpush1.msra.mxu0 0.0
    %1508 = vmatprep.subr.mxu0 0.0
    %1509 = vmatpush1.msra.mxu0 0.0
    %1510 = vmatprep.subr.mxu0 0.0
    %1511 = vmatpush1.msra.mxu0 0.0
    %1512 = vmatprep.subr.mxu0 0.0
    %1513 = vmatpush1.msra.mxu0 0.0
    %1514 = vmatprep.subr.mxu0 0.0
    %1515 = vmatpush1.msra.mxu0 0.0
    %1516 = vmatprep.subr.mxu0 0.0
    %1517 = vmatpush1.msra.mxu0 0.0
    %1518 = vmatprep.subr.mxu0 0.0
    %1519 = vmatpush1.msra.mxu0 0.0
    %1520 = vmatprep.subr.mxu0 0.0
    %1521 = vmatpush1.msra.mxu0 0.0
    %1522 = vmatprep.subr.mxu0 0.0
    %1523 = vmatpush1.msra.mxu0 0.0
    %1524 = vmatprep.subr.mxu0 0.0
    %1525 = vmatpush1.msra.mxu0 0.0
    %1526 = vmatprep.subr.mxu0 0.0
    %1527 = vmatpush1.msra.mxu0 0.0
    %1528 = vmatprep.subr.mxu0 0.0
    %1529 = vmatpush1.msra.mxu0 0.0
    %1530 = vmatprep.subr.mxu0 0.0
    %1531 = vmatpush1.msra.mxu0 0.0
    %1532 = vmatprep.subr.mxu0 0.0
    %1533 = vmatpush1.msra.mxu0 0.0
    %1534 = vmatprep.mubr.f32.mxu0 0.0
    %1535 = vmatmul.mubr.f32.gmra.mrb[0].mxu0 %v1465
    %v1536 = vpop.f32.mrb[0].mxu0
    %v1537 = vadd.f32 %v1463, %v1536
    %v1538 = vpop.f32.mrb[0].mxu0
    %1539 = vmatprep.mubr.f32.mxu0 0.0
    %1540 = vmatmul.mubr.f32.gmra.mrb[0].mxu0 %v1468
    %v1541 = vpop.f32.mrb[0].mxu0
    %v1542 = vadd.f32 %v1463, %v1541
    %v1543 = vpop.f32.mrb[0].mxu0
    %1544 = vdwg.mxu0
    %v1545 = vxor.u32 %v1537, 2147483648
    %v1546 = vxor.u32 %v1542, 2147483648
    %v1547 = vmul.f32 %v1545, 1.442695
    %v1548 = vpow.pop %v1547
    %v1549 = vmul.f32 %v1546, 1.442695
    %v1550 = vpow.pop %v1549
    %v1551 = vadd.f32 %v1548, 1.0
    %v1552 = vadd.f32 %v1550, 1.0
    %v1553 = vrcp.pop %v1551
    %v1554 = vmul.f32 1.0, %v1553
    %v1555 = vrcp.pop %v1552
    %v1556 = vmul.f32 1.0, %v1555
    %v1557 = vmul.f32 %v1430, %v1554
    %v1558 = vmul.f32 %v1435, %v1556
    %v1559 = vmul.f32 %v1440, %v1554
    %v1560 = vmul.f32 %v1445, %v1556
    %v1561 = vmul.f32 %v1450, %v1554
    %v1562 = vmul.f32 %v1455, %v1556
    %vm1563 = vcmask 97344
    %v1564 = vsel %vm1563, %v1334, -inf
    %1565 = vmax.xlane.f32.xlu0 %v1564
    %v1566 = vpop.xlane.xlu0 %1565
    %v1567 = vsel %vm1563, %v1339, -inf
    %1568 = vmax.xlane.f32.xlu0 %v1567
    %v1569 = vpop.xlane.xlu0 %1568
    %v1570 = vsub.f32 %v1334, %v1566
    %v1571 = vsub.f32 %v1339, %v1569
    %1574 = vrot.lane.b32.xlu0 %v1570, 124
    %v1575 = vpop.permute.xlu0 %1574
    %1576 = vrot.lane.b32.xlu0 %v1571, 124
    %v1577 = vpop.permute.xlu0 %1576
    %v1580 = vmul.f32 %v1557, 1.442695
    %v1581 = vpow.pop %v1580
    %v1582 = vmul.f32 %v1558, 1.442695
    %v1583 = vpow.pop %v1582
    %v1584 = vmul.f32 %v1559, 1.442695
    %v1585 = vpow.pop %v1584
    %v1586 = vmul.f32 %v1560, 1.442695
    %v1587 = vpow.pop %v1586
    %v1588 = vmul.f32 %v1561, 1.442695
    %v1589 = vpow.pop %v1588
    %v1590 = vmul.f32 %v1562, 1.442695
    %v1591 = vpow.pop %v1590
    %v1592 = vmul.f32 %v1575, 1.442695
    %v1593 = vpow.pop %v1592
    %v1594 = vmul.f32 %v1577, 1.442695
    %v1595 = vpow.pop %v1594
    %1598 = vrot.lane.b32.xlu0 %v1593, 124
    %v1599 = vpop.permute.xlu0 %1598
    %1600 = vrot.lane.b32.xlu0 %v1595, 124
    %v1601 = vpop.permute.xlu0 %1600
    %vm1604 = vcmask 31744
    %v1605 = vsel %vm1604, %v1599, 0.0
    %1606 = vadd.xlane.f32.xlu0 %v1605
    %v1607 = vpop.xlane.xlu0 %1606
    %v1608 = vsel %vm1604, %v1601, 0.0
    %1609 = vadd.xlane.f32.xlu0 %v1608
    %v1610 = vpop.xlane.xlu0 %1609
    %v1611 = vrcp.pop %v1607
    %v1612 = vrcp.pop %v1610
    %v1613 = vmul.f32 %v1593, %v1611
    %v1614 = vmul.f32 %v1595, %v1612
    %1617 = vrot.lane.b32.xlu0 %v1559, 4
    %v1618 = vpop.permute.xlu0 %1617
    %1619 = vrot.lane.b32.xlu0 %v1560, 4
    %v1620 = vpop.permute.xlu0 %1619
    %1625 = vrot.lane.b32.xlu0 %v1561, 8
    %v1626 = vpop.permute.xlu0 %1625
    %1627 = vrot.lane.b32.xlu0 %v1562, 8
    %v1628 = vpop.permute.xlu0 %1627
    %1633 = vrot.lane.b32.xlu0 %v1581, 8
    %v1634 = vpop.permute.xlu0 %1633
    %1635 = vrot.lane.b32.xlu0 %v1583, 8
    %v1636 = vpop.permute.xlu0 %1635
    %1641 = vrot.lane.b32.xlu0 %v1585, 12
    %v1642 = vpop.permute.xlu0 %1641
    %1643 = vrot.lane.b32.xlu0 %v1587, 12
    %v1644 = vpop.permute.xlu0 %1643
    %1649 = vrot.lane.b32.xlu0 %v1589, 16
    %v1650 = vpop.permute.xlu0 %1649
    %1651 = vrot.lane.b32.xlu0 %v1591, 16
    %v1652 = vpop.permute.xlu0 %1651
    %1657 = vrot.lane.b32.xlu0 %v1613, 20
    %v1658 = vpop.permute.xlu0 %1657
    %1659 = vrot.lane.b32.xlu0 %v1614, 20
    %v1660 = vpop.permute.xlu0 %1659
    %v1663 = vsel %vm1604, %v1557, %v1618
    %v1664 = vsel %vm1604, %v1558, %v1620
    %v1665 = vsel %vm24, %v1663, %v1626
    %v1666 = vsel %vm24, %v1664, %v1628
    %vm1667 = vcmask 97280
    %v1668 = vsel %vm1667, %v1665, %v1634
    %v1669 = vsel %vm1667, %v1666, %v1636
    %vm1670 = vcmask 130048
    %v1671 = vsel %vm1670, %v1668, %v1642
    %v1672 = vsel %vm1670, %v1669, %v1644
    %vm1673 = vcmask 162816
    %v1674 = vsel %vm1673, %v1671, %v1650
    %v1675 = vsel %vm1673, %v1672, %v1652
    %v1676 = vsel %vm1250, %v1674, %v1658
    %v1677 = vsel %vm1250, %v1675, %v1660
    %vm1678 = vcmask 228352
    %1679 = vst.msk [vmem:[#allocation2] sm:$0xff] %vm1678, %v1676
    %1680 = vst.msk [vmem:[#allocation2 + $0x8] sm:$0xff] %vm1678, %v1677
    // Predicated region
    $region14: #{tpu_custom_call.1} parent=1 // pred_check
      _
    $region15: #{tpu_custom_call.1} parent=1 // pred_check_branch
      %1682 = sbr.rel (0) target = $region17
    $region16: #{tpu_custom_call.1} parent=1 // pred_region
      %s1684 = ssub.s32 256, 256
      %1685 = vsyncadd [#allocation3], %s1684
      %s1686 = sshll.u32 [#allocation2], 4
      %s1687 = int_to_ptr.vmem [resolvable:$true] %s1686
      %1692 = dma.vmem_to_hbm [thread:$0]  %s1687, 256, %s3, [#allocation3], 128, 128, 8
    $region17: #{tpu_custom_call.1} parent=1 // pred_fallthru
      _
    // Predicated region
    $region18: #{tpu_custom_call.1} parent=1 // pred_check
      _
    $region19: #{tpu_custom_call.1} parent=1 // pred_check_branch
      %1694 = sbr.rel (0) target = $region21
    $region20: #{tpu_custom_call.1} parent=1 // pred_region
      %1695 = dma.done [#allocation3], 256
    $region21: #{tpu_custom_call.1} parent=1 // pred_fallthru
      _
    %1696 = vsyncpa [#allocation3], 1

</llo_original>
